<compile_context>
chip_gen: v5e
topology: v5e:2x2
jax: 0.10.0
libtpu: 0.0.40
codegen_flags: <defaults>
</compile_context>

<pallas_src>
import jax
import jax.numpy as jnp
from jax.experimental import pallas as pl
from jax.experimental.pallas import tpu as pltpu


def _decoder_kernel(
    emb_ref,                 # (T, B, E)   token embeddings, time-major
    img_ref,                 # (B, P, F)   image features
    Uw_ref, Ub_ref,          # (F, A), (1, A)        attention U
    Ww_ref, Wb_ref,          # (H, A), (1, A)        attention W
    Aw_ref, Ab_ref,          # (1, A), (1, 1)        attention A (PyTorch weight shape)
    HCw_ref, HCb_ref,        # (F, 2H), (1, 2H)      fused [hidden_state_init | cell_state_init]
    Wie_ref, Wic_ref,        # (E, 4H), (F, 4H)      LSTMCell input weights, pre-split
    bih_ref,                 # (1, 4H)
    Whh_ref, bhh_ref,        # (H, 4H), (1, 4H)      LSTMCell hidden weights
    Wf_ref, bf_ref,          # (H, V), (1, V)        fcl
    preds_ref,               # (T*B, V)   output logits, row t*B+b
    alphas_ref,              # (T*B, P)   attention weights, row t*B+b
    h_all_sc,                # (T*B, H)   VMEM scratch: per-step hidden states
):
    T, B, _ = emb_ref.shape
    H = Whh_ref.shape[0]

    img = img_ref[...]                                              # (B, P, F), already f32

    # --- init_hidden_state(): one fused matmul, split into h / c ---
    fmean = jnp.mean(img, axis=1)                                   # (B, F)
    hc0 = jnp.dot(fmean, HCw_ref[...],
                  preferred_element_type=jnp.float32) + HCb_ref[...]
    h = hc0[:, :H]
    c = hc0[:, H:2 * H]

    # --- hoisted time-invariant attention projection U(img) + bias ---
    u_hs = jnp.einsum('bpf,fa->bpa', img, Uw_ref[...],
                      preferred_element_type=jnp.float32) + Ub_ref[...][None]   # (B, P, A)

    # Loop-invariant weights loaded once.
    Ww = Ww_ref[...]
    Wb = Wb_ref[...]
    Aw_b = Aw_ref[...][None]                                        # (1, 1, A)
    Ab = Ab_ref[...]                                                # (1, 1)
    Wie = Wie_ref[...]
    Wic = Wic_ref[...]
    bih = bih_ref[...]
    Whh = Whh_ref[...]
    bhh = bhh_ref[...]

    # --- recurrence: T is small and static, fully unrolled for LLO visibility ---
    for t in range(T):
        # AttentionLayer
        w_hs = jnp.dot(h, Ww, preferred_element_type=jnp.float32) + Wb          # (B, A)
        combined = jnp.tanh(u_hs + w_hs[:, None, :])                             # (B, P, A)
        # Small A: VPU mul + reduce over A (cheap at this size).
        scores = jnp.sum(combined * Aw_b, axis=2) + Ab                           # (B, P)
        s_max = jnp.max(scores, axis=1, keepdims=True)
        e = jnp.exp(scores - s_max)
        denom = jnp.sum(e, axis=1, keepdims=True)
        alpha = e * pl.reciprocal(denom, approx=True)                            # softmax over P
        context = jnp.sum(img * alpha[:, :, None], axis=1)                       # (B, F)

        # LSTMCell (PyTorch gate order i, f, g, o) — concat-free: two input dots.
        emb_t = emb_ref[t]                                                       # (B, E)
        gates = (jnp.dot(emb_t, Wie, preferred_element_type=jnp.float32)
                 + jnp.dot(context, Wic, preferred_element_type=jnp.float32) + bih
                 + jnp.dot(h, Whh, preferred_element_type=jnp.float32) + bhh)    # (B, 4H)
        i_g = jax.nn.sigmoid(gates[:, 0 * H:1 * H])
        f_g = jax.nn.sigmoid(gates[:, 1 * H:2 * H])
        g_g = jnp.tanh(gates[:, 2 * H:3 * H])
        o_g = jax.nn.sigmoid(gates[:, 3 * H:4 * H])
        c = f_g * c + i_g * g_g
        h = o_g * jnp.tanh(c)

        # Stash per-step results in VMEM; HBM writeback happens once at kernel end.
        h_all_sc[t * B:(t + 1) * B, :] = h
        alphas_ref[t * B:(t + 1) * B, :] = alpha

    # --- deferred vocab projection: one batched (T*B, H) @ (H, V) matmul ---
    # TODO(synk): nn.Dropout treated as identity (eval mode); for training-mode masks
    #             use pltpu.prng_seed / pltpu.prng_random_bits inside the kernel.
    preds_ref[...] = (jnp.dot(h_all_sc[...], Wf_ref[...],
                              preferred_element_type=jnp.float32) + bf_ref[...])


def init_params(key, F, H, A, E, V):
    ks = jax.random.split(key, 16)
    w = lambda k, shape, s=0.1: jax.random.normal(k, shape, jnp.float32) * s
    return dict(
        emb=w(ks[0], (V, E)),                       # nn.Embedding(vocab, emb)
        Uw=w(ks[1], (F, A)), Ub=w(ks[2], (1, A)),   # attention.U
        Ww=w(ks[3], (H, A)), Wb=w(ks[4], (1, A)),   # attention.W
        Aw=w(ks[5], (1, A)), Ab=w(ks[6], (1, 1)),   # attention.A
        Hw=w(ks[7], (F, H)), Hb=w(ks[8], (1, H)),   # hidden_state_init
        Cw=w(ks[9], (F, H)), Cb=w(ks[10], (1, H)),  # cell_state_init
        Wih=w(ks[11], (E + F, 4 * H)), bih=w(ks[12], (1, 4 * H)),
        Whh=w(ks[13], (H, 4 * H)), bhh=w(ks[14], (1, 4 * H)),
        Wf=w(ks[15], (H, V)), bf=jnp.zeros((1, V), jnp.float32),
    )


def attention_decoder_forward(params, img_features, captions):
    B, P, F = img_features.shape
    T = int(captions.shape[1]) - 1
    E = params['emb'].shape[1]
    H = params['Hw'].shape[1]
    A = params['Uw'].shape[1]
    V = params['Wf'].shape[1]

    # Glue: embedding gather + time-major reshape, and weight preprocessing.
    emb_all = jnp.take(params['emb'], captions, axis=0)            # (B, T+1, E)
    emb_seq = jnp.transpose(emb_all[:, :T, :], (1, 0, 2))          # (T, B, E)
    HCw = jnp.concatenate([params['Hw'], params['Cw']], axis=1)    # (F, 2H)
    HCb = jnp.concatenate([params['Hb'], params['Cb']], axis=1)    # (1, 2H)
    Wie = params['Wih'][:E]                                        # (E, 4H)
    Wic = params['Wih'][E:]                                        # (F, 4H)

    full = lambda shape: pl.BlockSpec(shape, lambda i, n=len(shape): (0,) * n)
    in_specs = [
        full((T, B, E)),                # embeddings (whole sequence, one DMA)
        full((B, P, F)),                # image features
        full((F, A)), full((1, A)),     # U
        full((H, A)), full((1, A)),     # W
        full((1, A)), full((1, 1)),     # A
        full((F, 2 * H)), full((1, 2 * H)),          # fused h/c init
        full((E, 4 * H)), full((F, 4 * H)), full((1, 4 * H)),   # Wih split + bias
        full((H, 4 * H)), full((1, 4 * H)),                     # Whh + bias
        full((H, V)), full((1, V)),                             # fcl
    ]
    out_specs = [full((T * B, V)), full((T * B, P))]
    out_shape = (
        jax.ShapeDtypeStruct((T * B, V), jnp.float32),
        jax.ShapeDtypeStruct((T * B, P), jnp.float32),
    )
    grid_spec = pltpu.PrefetchScalarGridSpec(
        num_scalar_prefetch=0,
        grid=(1,),                      # single invocation; recurrence runs in-kernel
        in_specs=in_specs,
        out_specs=out_specs,
        scratch_shapes=[pltpu.VMEM((T * B, H), jnp.float32)],      # per-step hidden states
    )
    preds_flat, alphas_flat = pl.pallas_call(
        _decoder_kernel,
        out_shape=out_shape,
        grid_spec=grid_spec,
        compiler_params=pltpu.CompilerParams(dimension_semantics=("arbitrary",)),
    )(emb_seq, img_features,
      params['Uw'], params['Ub'], params['Ww'], params['Wb'],
      params['Aw'], params['Ab'],
      HCw, HCb, Wie, Wic, params['bih'], params['Whh'], params['bhh'],
      params['Wf'], params['bf'])

    preds = jnp.transpose(preds_flat.reshape(T, B, V), (1, 0, 2))    # (B, T, V)
    alphas = jnp.transpose(alphas_flat.reshape(T, B, P), (1, 0, 2))  # (B, T, P)
    return preds, alphas


def reference_forward(params, img_features, captions):
    """Pure-JAX mirror of the PyTorch forward (eval-mode dropout)."""
    B, P, F = img_features.shape
    T = captions.shape[1] - 1
    H = params['Hw'].shape[1]
    emb_all = params['emb'][captions]
    fmean = img_features.mean(axis=1)
    h = fmean @ params['Hw'] + params['Hb']
    c = fmean @ params['Cw'] + params['Cb']
    preds, alphas = [], []
    for t in range(T):
        u_hs = jnp.einsum('bpf,fa->bpa', img_features, params['Uw']) + params['Ub']
        w_hs = h @ params['Ww'] + params['Wb']
        combined = jnp.tanh(u_hs + w_hs[:, None, :])
        scores = jnp.sum(combined * params['Aw'][None], axis=2) + params['Ab']
        alpha = jax.nn.softmax(scores, axis=1)
        context = jnp.sum(img_features * alpha[:, :, None], axis=1)
        x = jnp.concatenate([emb_all[:, t], context], axis=1)
        gates = x @ params['Wih'] + params['bih'] + h @ params['Whh'] + params['bhh']
        i_g = jax.nn.sigmoid(gates[:, :H]); f_g = jax.nn.sigmoid(gates[:, H:2 * H])
        g_g = jnp.tanh(gates[:, 2 * H:3 * H]); o_g = jax.nn.sigmoid(gates[:, 3 * H:])
        c = f_g * c + i_g * g_g
        h = o_g * jnp.tanh(c)
        preds.append(h @ params['Wf'] + params['bf'])
        alphas.append(alpha)
    return jnp.stack(preds, axis=1), jnp.stack(alphas, axis=1)


if __name__ == "__main__":
    # Small shapes consistent with the module's forward.
    B, P = 2, 8                          # batch, number of image feature vectors
    F, H, A, E, V = 32, 32, 16, 16, 64   # feature/hidden/attention/embedding/vocab dims
    T_plus1 = 9                          # caption length (8 decode steps)

    key = jax.random.PRNGKey(0)
    pkey, ikey, ckey = jax.random.split(key, 3)
    params = init_params(pkey, F, H, A, E, V)
    img_features = jax.random.normal(ikey, (B, P, F), jnp.float32)
    captions = jax.random.randint(ckey, (B, T_plus1), 0, V, dtype=jnp.int32)

    preds, alphas = jax.jit(attention_decoder_forward)(params, img_features, captions)
    preds, alphas = jax.block_until_ready((preds, alphas))

    ref_p, ref_a = reference_forward(params, img_features, captions)
    assert preds.shape == (B, T_plus1 - 1, V)
    assert alphas.shape == (B, T_plus1 - 1, P)
    # Slightly looser tolerance than f32-exact to allow the EUP approximate reciprocal
    # in the softmax denominator.
    assert jnp.allclose(preds, ref_p, atol=5e-3, rtol=5e-3)
    assert jnp.allclose(alphas, ref_a, atol=5e-3, rtol=5e-3)
    print("KERNEL_OK")
</pallas_src>

<mosaic_0001>
module attributes {stable_mosaic.version = 11 : i64} {
  func.func @_decoder_kernel(%arg0: i32, %arg1: memref<8x2x16xf32, #tpu.memory_space<vmem>>, %arg2: memref<2x8x32xf32, #tpu.memory_space<vmem>>, %arg3: memref<32x16xf32, #tpu.memory_space<vmem>>, %arg4: memref<1x16xf32, #tpu.memory_space<vmem>>, %arg5: memref<32x16xf32, #tpu.memory_space<vmem>>, %arg6: memref<1x16xf32, #tpu.memory_space<vmem>>, %arg7: memref<1x16xf32, #tpu.memory_space<vmem>>, %arg8: memref<1x1xf32, #tpu.memory_space<vmem>>, %arg9: memref<32x64xf32, #tpu.memory_space<vmem>>, %arg10: memref<1x64xf32, #tpu.memory_space<vmem>>, %arg11: memref<16x128xf32, #tpu.memory_space<vmem>>, %arg12: memref<32x128xf32, #tpu.memory_space<vmem>>, %arg13: memref<1x128xf32, #tpu.memory_space<vmem>>, %arg14: memref<32x128xf32, #tpu.memory_space<vmem>>, %arg15: memref<1x128xf32, #tpu.memory_space<vmem>>, %arg16: memref<32x64xf32, #tpu.memory_space<vmem>>, %arg17: memref<1x64xf32, #tpu.memory_space<vmem>>, %arg18: memref<16x64xf32, #tpu.memory_space<vmem>>, %arg19: memref<16x8xf32, #tpu.memory_space<vmem>>, %arg20: memref<16x32xf32, #tpu.memory_space<vmem>>) attributes {dimension_semantics = [#tpu.dimension_semantics<arbitrary>], iteration_bounds = array<i64: 1>, scalar_prefetch = 0 : i64, scratch_operands = 1 : i64, tpu.core_type = #tpu.core_type<tc>, window_params = [{pipeline_mode = #tpu.pipeline_mode<synchronous>, transform_indices = @transform_0, window_bounds = array<i64: 8, 2, 16>}, {pipeline_mode = #tpu.pipeline_mode<synchronous>, transform_indices = @transform_1, window_bounds = array<i64: 2, 8, 32>}, {pipeline_mode = #tpu.pipeline_mode<synchronous>, transform_indices = @transform_2, window_bounds = array<i64: 32, 16>}, {pipeline_mode = #tpu.pipeline_mode<synchronous>, transform_indices = @transform_3, window_bounds = array<i64: 1, 16>}, {pipeline_mode = #tpu.pipeline_mode<synchronous>, transform_indices = @transform_4, window_bounds = array<i64: 32, 16>}, {pipeline_mode = #tpu.pipeline_mode<synchronous>, transform_indices = @transform_5, window_bounds = array<i64: 1, 16>}, {pipeline_mode = #tpu.pipeline_mode<synchronous>, transform_indices = @transform_6, window_bounds = array<i64: 1, 16>}, {pipeline_mode = #tpu.pipeline_mode<synchronous>, transform_indices = @transform_7, window_bounds = array<i64: 1, 1>}, {pipeline_mode = #tpu.pipeline_mode<synchronous>, transform_indices = @transform_8, window_bounds = array<i64: 32, 64>}, {pipeline_mode = #tpu.pipeline_mode<synchronous>, transform_indices = @transform_9, window_bounds = array<i64: 1, 64>}, {pipeline_mode = #tpu.pipeline_mode<synchronous>, transform_indices = @transform_10, window_bounds = array<i64: 16, 128>}, {pipeline_mode = #tpu.pipeline_mode<synchronous>, transform_indices = @transform_11, window_bounds = array<i64: 32, 128>}, {pipeline_mode = #tpu.pipeline_mode<synchronous>, transform_indices = @transform_12, window_bounds = array<i64: 1, 128>}, {pipeline_mode = #tpu.pipeline_mode<synchronous>, transform_indices = @transform_13, window_bounds = array<i64: 32, 128>}, {pipeline_mode = #tpu.pipeline_mode<synchronous>, transform_indices = @transform_14, window_bounds = array<i64: 1, 128>}, {pipeline_mode = #tpu.pipeline_mode<synchronous>, transform_indices = @transform_15, window_bounds = array<i64: 32, 64>}, {pipeline_mode = #tpu.pipeline_mode<synchronous>, transform_indices = @transform_16, window_bounds = array<i64: 1, 64>}, {pipeline_mode = #tpu.pipeline_mode<synchronous>, transform_indices = @transform_17, window_bounds = array<i64: 16, 64>}, {pipeline_mode = #tpu.pipeline_mode<synchronous>, transform_indices = @transform_18, window_bounds = array<i64: 16, 8>}]} {
    %c0 = arith.constant 0 : index
    %c0_0 = arith.constant 0 : index
    %c0_1 = arith.constant 0 : index
    %0 = vector.load %arg2[%c0, %c0_0, %c0_1] : memref<2x8x32xf32, #tpu.memory_space<vmem>>, vector<2x8x32xf32>
    %cst = arith.constant dense<0.000000e+00> : vector<2x32xf32>
    %1 = vector.multi_reduction <add>, %0, %cst [1] : vector<2x8x32xf32> to vector<2x32xf32>
    %cst_2 = arith.constant 8.000000e+00 : f32
    %2 = vector.broadcast %cst_2 : f32 to vector<2x32xf32>
    %3 = arith.divf %1, %2 : vector<2x32xf32>
    %c0_3 = arith.constant 0 : index
    %c0_4 = arith.constant 0 : index
    %4 = vector.load %arg9[%c0_3, %c0_4] : memref<32x64xf32, #tpu.memory_space<vmem>>, vector<32x64xf32>
    %cst_5 = arith.constant dense<0.000000e+00> : vector<2x64xf32>
    %5 = tpu.matmul %3, %4, %cst_5 {dimension_numbers = #tpu.dot_dimension_numbers<[1], [0], [0], [1], [0, 0, 1, 1], [], []>} : vector<2x32xf32>, vector<32x64xf32>, vector<2x64xf32> -> vector<2x64xf32>
    %c0_6 = arith.constant 0 : index
    %c0_7 = arith.constant 0 : index
    %6 = vector.load %arg10[%c0_6, %c0_7] : memref<1x64xf32, #tpu.memory_space<vmem>>, vector<1x64xf32>
    %7 = vector.broadcast %6 : vector<1x64xf32> to vector<2x64xf32>
    %8 = arith.addf %5, %7 : vector<2x64xf32>
    %9 = vector.extract_strided_slice %8 {offsets = [0, 0], sizes = [2, 32], strides = [1, 1]} : vector<2x64xf32> to vector<2x32xf32>
    %10 = vector.extract_strided_slice %8 {offsets = [0, 32], sizes = [2, 32], strides = [1, 1]} : vector<2x64xf32> to vector<2x32xf32>
    %c0_8 = arith.constant 0 : index
    %c0_9 = arith.constant 0 : index
    %11 = vector.load %arg3[%c0_8, %c0_9] : memref<32x16xf32, #tpu.memory_space<vmem>>, vector<32x16xf32>
    "tpu.trace_start"() <{level = 10 : i32, message = "bpf,fa->bpa"}> : () -> ()
    %cst_10 = arith.constant dense<0.000000e+00> : vector<2x8x16xf32>
    %12 = tpu.matmul %0, %11, %cst_10 {dimension_numbers = #tpu.dot_dimension_numbers<[2], [0], [0, 1], [1], [0, 0, 0, 1, 1, 1], [], []>} : vector<2x8x32xf32>, vector<32x16xf32>, vector<2x8x16xf32> -> vector<2x8x16xf32>
    "tpu.trace_stop"() : () -> ()
    %c0_11 = arith.constant 0 : index
    %c0_12 = arith.constant 0 : index
    %13 = vector.load %arg4[%c0_11, %c0_12] : memref<1x16xf32, #tpu.memory_space<vmem>>, vector<1x16xf32>
    %14 = vector.shape_cast %13 : vector<1x16xf32> to vector<1x1x16xf32>
    %15 = vector.broadcast %14 : vector<1x1x16xf32> to vector<2x8x16xf32>
    %16 = arith.addf %12, %15 : vector<2x8x16xf32>
    %c0_13 = arith.constant 0 : index
    %c0_14 = arith.constant 0 : index
    %17 = vector.load %arg5[%c0_13, %c0_14] : memref<32x16xf32, #tpu.memory_space<vmem>>, vector<32x16xf32>
    %c0_15 = arith.constant 0 : index
    %c0_16 = arith.constant 0 : index
    %18 = vector.load %arg6[%c0_15, %c0_16] : memref<1x16xf32, #tpu.memory_space<vmem>>, vector<1x16xf32>
    %c0_17 = arith.constant 0 : index
    %c0_18 = arith.constant 0 : index
    %19 = vector.load %arg7[%c0_17, %c0_18] : memref<1x16xf32, #tpu.memory_space<vmem>>, vector<1x16xf32>
    %20 = vector.shape_cast %19 : vector<1x16xf32> to vector<1x1x16xf32>
    %c0_19 = arith.constant 0 : index
    %c0_20 = arith.constant 0 : index
    %21 = vector.load %arg8[%c0_19, %c0_20] : memref<1x1xf32, #tpu.memory_space<vmem>>, vector<1x1xf32>
    %c0_21 = arith.constant 0 : index
    %c0_22 = arith.constant 0 : index
    %22 = vector.load %arg11[%c0_21, %c0_22] : memref<16x128xf32, #tpu.memory_space<vmem>>, vector<16x128xf32>
    %c0_23 = arith.constant 0 : index
    %c0_24 = arith.constant 0 : index
    %23 = vector.load %arg12[%c0_23, %c0_24] : memref<32x128xf32, #tpu.memory_space<vmem>>, vector<32x128xf32>
    %c0_25 = arith.constant 0 : index
    %c0_26 = arith.constant 0 : index
    %24 = vector.load %arg13[%c0_25, %c0_26] : memref<1x128xf32, #tpu.memory_space<vmem>>, vector<1x128xf32>
    %c0_27 = arith.constant 0 : index
    %c0_28 = arith.constant 0 : index
    %25 = vector.load %arg14[%c0_27, %c0_28] : memref<32x128xf32, #tpu.memory_space<vmem>>, vector<32x128xf32>
    %c0_29 = arith.constant 0 : index
    %c0_30 = arith.constant 0 : index
    %26 = vector.load %arg15[%c0_29, %c0_30] : memref<1x128xf32, #tpu.memory_space<vmem>>, vector<1x128xf32>
    %cst_31 = arith.constant dense<0.000000e+00> : vector<2x16xf32>
    %27 = tpu.matmul %9, %17, %cst_31 {dimension_numbers = #tpu.dot_dimension_numbers<[1], [0], [0], [1], [0, 0, 1, 1], [], []>} : vector<2x32xf32>, vector<32x16xf32>, vector<2x16xf32> -> vector<2x16xf32>
    %28 = vector.broadcast %18 : vector<1x16xf32> to vector<2x16xf32>
    %29 = arith.addf %27, %28 : vector<2x16xf32>
    %30 = vector.shape_cast %29 : vector<2x16xf32> to vector<2x1x16xf32>
    %31 = vector.broadcast %30 : vector<2x1x16xf32> to vector<2x8x16xf32>
    %32 = arith.addf %16, %31 : vector<2x8x16xf32>
    %33 = math.tanh %32 : vector<2x8x16xf32>
    %34 = vector.broadcast %20 : vector<1x1x16xf32> to vector<2x8x16xf32>
    %35 = arith.mulf %33, %34 : vector<2x8x16xf32>
    %cst_32 = arith.constant dense<0.000000e+00> : vector<2x8xf32>
    %36 = vector.multi_reduction <add>, %35, %cst_32 [2] : vector<2x8x16xf32> to vector<2x8xf32>
    %37 = vector.broadcast %21 : vector<1x1xf32> to vector<2x8xf32>
    %38 = arith.addf %36, %37 : vector<2x8xf32>
    %cst_33 = arith.constant dense<0xFF800000> : vector<2xf32>
    %39 = vector.multi_reduction <maximumf>, %38, %cst_33 [1] : vector<2x8xf32> to vector<2xf32>
    %40 = vector.shape_cast %39 : vector<2xf32> to vector<2x1xf32>
    %41 = vector.broadcast %40 : vector<2x1xf32> to vector<2x8xf32>
    %42 = arith.subf %38, %41 : vector<2x8xf32>
    %43 = math.exp %42 : vector<2x8xf32>
    %cst_34 = arith.constant dense<0.000000e+00> : vector<2xf32>
    %44 = vector.multi_reduction <add>, %43, %cst_34 [1] : vector<2x8xf32> to vector<2xf32>
    %45 = vector.shape_cast %44 : vector<2xf32> to vector<2x1xf32>
    %46 = tpu.reciprocal %45 {approx = true} : vector<2x1xf32> -> vector<2x1xf32>
    %47 = vector.broadcast %46 : vector<2x1xf32> to vector<2x8xf32>
    %48 = arith.mulf %43, %47 : vector<2x8xf32>
    %49 = vector.shape_cast %48 : vector<2x8xf32> to vector<2x8x1xf32>
    %50 = vector.broadcast %49 : vector<2x8x1xf32> to vector<2x8x32xf32>
    %51 = arith.mulf %0, %50 : vector<2x8x32xf32>
    %cst_35 = arith.constant dense<0.000000e+00> : vector<2x32xf32>
    %52 = vector.multi_reduction <add>, %51, %cst_35 [1] : vector<2x8x32xf32> to vector<2x32xf32>
    %c0_36 = arith.constant 0 : index
    %c0_37 = arith.constant 0 : index
    %c0_38 = arith.constant 0 : index
    %53 = vector.load %arg1[%c0_36, %c0_37, %c0_38] : memref<8x2x16xf32, #tpu.memory_space<vmem>>, vector<1x2x16xf32>
    %54 = vector.shape_cast %53 : vector<1x2x16xf32> to vector<2x16xf32>
    %cst_39 = arith.constant dense<0.000000e+00> : vector<2x128xf32>
    %55 = tpu.matmul %54, %22, %cst_39 {dimension_numbers = #tpu.dot_dimension_numbers<[1], [0], [0], [1], [0, 0, 1, 1], [], []>} : vector<2x16xf32>, vector<16x128xf32>, vector<2x128xf32> -> vector<2x128xf32>
    %cst_40 = arith.constant dense<0.000000e+00> : vector<2x128xf32>
    %56 = tpu.matmul %52, %23, %cst_40 {dimension_numbers = #tpu.dot_dimension_numbers<[1], [0], [0], [1], [0, 0, 1, 1], [], []>} : vector<2x32xf32>, vector<32x128xf32>, vector<2x128xf32> -> vector<2x128xf32>
    %57 = arith.addf %55, %56 : vector<2x128xf32>
    %58 = vector.broadcast %24 : vector<1x128xf32> to vector<2x128xf32>
    %59 = arith.addf %57, %58 : vector<2x128xf32>
    %cst_41 = arith.constant dense<0.000000e+00> : vector<2x128xf32>
    %60 = tpu.matmul %9, %25, %cst_41 {dimension_numbers = #tpu.dot_dimension_numbers<[1], [0], [0], [1], [0, 0, 1, 1], [], []>} : vector<2x32xf32>, vector<32x128xf32>, vector<2x128xf32> -> vector<2x128xf32>
    %61 = arith.addf %59, %60 : vector<2x128xf32>
    %62 = vector.broadcast %26 : vector<1x128xf32> to vector<2x128xf32>
    %63 = arith.addf %61, %62 : vector<2x128xf32>
    %64 = vector.extract_strided_slice %63 {offsets = [0, 0], sizes = [2, 32], strides = [1, 1]} : vector<2x128xf32> to vector<2x32xf32>
    %65 = arith.negf %64 : vector<2x32xf32>
    %66 = math.exp %65 : vector<2x32xf32>
    %cst_42 = arith.constant 1.000000e+00 : f32
    %67 = vector.broadcast %cst_42 : f32 to vector<2x32xf32>
    %68 = arith.addf %67, %66 : vector<2x32xf32>
    %69 = arith.divf %67, %68 : vector<2x32xf32>
    %70 = vector.extract_strided_slice %63 {offsets = [0, 32], sizes = [2, 32], strides = [1, 1]} : vector<2x128xf32> to vector<2x32xf32>
    %71 = arith.negf %70 : vector<2x32xf32>
    %72 = math.exp %71 : vector<2x32xf32>
    %cst_43 = arith.constant 1.000000e+00 : f32
    %73 = vector.broadcast %cst_43 : f32 to vector<2x32xf32>
    %74 = arith.addf %73, %72 : vector<2x32xf32>
    %75 = arith.divf %73, %74 : vector<2x32xf32>
    %76 = vector.extract_strided_slice %63 {offsets = [0, 64], sizes = [2, 32], strides = [1, 1]} : vector<2x128xf32> to vector<2x32xf32>
    %77 = math.tanh %76 : vector<2x32xf32>
    %78 = vector.extract_strided_slice %63 {offsets = [0, 96], sizes = [2, 32], strides = [1, 1]} : vector<2x128xf32> to vector<2x32xf32>
    %79 = arith.negf %78 : vector<2x32xf32>
    %80 = math.exp %79 : vector<2x32xf32>
    %cst_44 = arith.constant 1.000000e+00 : f32
    %81 = vector.broadcast %cst_44 : f32 to vector<2x32xf32>
    %82 = arith.addf %81, %80 : vector<2x32xf32>
    %83 = arith.divf %81, %82 : vector<2x32xf32>
    %84 = arith.mulf %75, %10 : vector<2x32xf32>
    %85 = arith.mulf %69, %77 : vector<2x32xf32>
    %86 = arith.addf %84, %85 : vector<2x32xf32>
    %87 = math.tanh %86 : vector<2x32xf32>
    %88 = arith.mulf %83, %87 : vector<2x32xf32>
    %c0_45 = arith.constant 0 : index
    %c0_46 = arith.constant 0 : index
    %89 = vector.load %arg20[%c0_45, %c0_46] : memref<16x32xf32, #tpu.memory_space<vmem>>, vector<2x32xf32>
    tpu.vector_store %arg20[%c0_45, %c0_46], %88 {strides = array<i32>} : memref<16x32xf32, #tpu.memory_space<vmem>>, vector<2x32xf32>,
    %c0_47 = arith.constant 0 : index
    %c0_48 = arith.constant 0 : index
    %90 = vector.load %arg19[%c0_47, %c0_48] : memref<16x8xf32, #tpu.memory_space<vmem>>, vector<2x8xf32>
    tpu.vector_store %arg19[%c0_47, %c0_48], %48 {strides = array<i32>} : memref<16x8xf32, #tpu.memory_space<vmem>>, vector<2x8xf32>,
    %cst_49 = arith.constant dense<0.000000e+00> : vector<2x16xf32>
    %91 = tpu.matmul %88, %17, %cst_49 {dimension_numbers = #tpu.dot_dimension_numbers<[1], [0], [0], [1], [0, 0, 1, 1], [], []>} : vector<2x32xf32>, vector<32x16xf32>, vector<2x16xf32> -> vector<2x16xf32>
    %92 = vector.broadcast %18 : vector<1x16xf32> to vector<2x16xf32>
    %93 = arith.addf %91, %92 : vector<2x16xf32>
    %94 = vector.shape_cast %93 : vector<2x16xf32> to vector<2x1x16xf32>
    %95 = vector.broadcast %94 : vector<2x1x16xf32> to vector<2x8x16xf32>
    %96 = arith.addf %16, %95 : vector<2x8x16xf32>
    %97 = math.tanh %96 : vector<2x8x16xf32>
    %98 = vector.broadcast %20 : vector<1x1x16xf32> to vector<2x8x16xf32>
    %99 = arith.mulf %97, %98 : vector<2x8x16xf32>
    %cst_50 = arith.constant dense<0.000000e+00> : vector<2x8xf32>
    %100 = vector.multi_reduction <add>, %99, %cst_50 [2] : vector<2x8x16xf32> to vector<2x8xf32>
    %101 = vector.broadcast %21 : vector<1x1xf32> to vector<2x8xf32>
    %102 = arith.addf %100, %101 : vector<2x8xf32>
    %cst_51 = arith.constant dense<0xFF800000> : vector<2xf32>
    %103 = vector.multi_reduction <maximumf>, %102, %cst_51 [1] : vector<2x8xf32> to vector<2xf32>
    %104 = vector.shape_cast %103 : vector<2xf32> to vector<2x1xf32>
    %105 = vector.broadcast %104 : vector<2x1xf32> to vector<2x8xf32>
    %106 = arith.subf %102, %105 : vector<2x8xf32>
    %107 = math.exp %106 : vector<2x8xf32>
    %cst_52 = arith.constant dense<0.000000e+00> : vector<2xf32>
    %108 = vector.multi_reduction <add>, %107, %cst_52 [1] : vector<2x8xf32> to vector<2xf32>
    %109 = vector.shape_cast %108 : vector<2xf32> to vector<2x1xf32>
    %110 = tpu.reciprocal %109 {approx = true} : vector<2x1xf32> -> vector<2x1xf32>
    %111 = vector.broadcast %110 : vector<2x1xf32> to vector<2x8xf32>
    %112 = arith.mulf %107, %111 : vector<2x8xf32>
    %113 = vector.shape_cast %112 : vector<2x8xf32> to vector<2x8x1xf32>
    %114 = vector.broadcast %113 : vector<2x8x1xf32> to vector<2x8x32xf32>
    %115 = arith.mulf %0, %114 : vector<2x8x32xf32>
    %cst_53 = arith.constant dense<0.000000e+00> : vector<2x32xf32>
    %116 = vector.multi_reduction <add>, %115, %cst_53 [1] : vector<2x8x32xf32> to vector<2x32xf32>
    %c1 = arith.constant 1 : index
    %c0_54 = arith.constant 0 : index
    %c0_55 = arith.constant 0 : index
    %117 = vector.load %arg1[%c1, %c0_54, %c0_55] : memref<8x2x16xf32, #tpu.memory_space<vmem>>, vector<1x2x16xf32>
    %118 = vector.shape_cast %117 : vector<1x2x16xf32> to vector<2x16xf32>
    %cst_56 = arith.constant dense<0.000000e+00> : vector<2x128xf32>
    %119 = tpu.matmul %118, %22, %cst_56 {dimension_numbers = #tpu.dot_dimension_numbers<[1], [0], [0], [1], [0, 0, 1, 1], [], []>} : vector<2x16xf32>, vector<16x128xf32>, vector<2x128xf32> -> vector<2x128xf32>
    %cst_57 = arith.constant dense<0.000000e+00> : vector<2x128xf32>
    %120 = tpu.matmul %116, %23, %cst_57 {dimension_numbers = #tpu.dot_dimension_numbers<[1], [0], [0], [1], [0, 0, 1, 1], [], []>} : vector<2x32xf32>, vector<32x128xf32>, vector<2x128xf32> -> vector<2x128xf32>
    %121 = arith.addf %119, %120 : vector<2x128xf32>
    %122 = vector.broadcast %24 : vector<1x128xf32> to vector<2x128xf32>
    %123 = arith.addf %121, %122 : vector<2x128xf32>
    %cst_58 = arith.constant dense<0.000000e+00> : vector<2x128xf32>
    %124 = tpu.matmul %88, %25, %cst_58 {dimension_numbers = #tpu.dot_dimension_numbers<[1], [0], [0], [1], [0, 0, 1, 1], [], []>} : vector<2x32xf32>, vector<32x128xf32>, vector<2x128xf32> -> vector<2x128xf32>
    %125 = arith.addf %123, %124 : vector<2x128xf32>
    %126 = vector.broadcast %26 : vector<1x128xf32> to vector<2x128xf32>
    %127 = arith.addf %125, %126 : vector<2x128xf32>
    %128 = vector.extract_strided_slice %127 {offsets = [0, 0], sizes = [2, 32], strides = [1, 1]} : vector<2x128xf32> to vector<2x32xf32>
    %129 = arith.negf %128 : vector<2x32xf32>
    %130 = math.exp %129 : vector<2x32xf32>
    %cst_59 = arith.constant 1.000000e+00 : f32
    %131 = vector.broadcast %cst_59 : f32 to vector<2x32xf32>
    %132 = arith.addf %131, %130 : vector<2x32xf32>
    %133 = arith.divf %131, %132 : vector<2x32xf32>
    %134 = vector.extract_strided_slice %127 {offsets = [0, 32], sizes = [2, 32], strides = [1, 1]} : vector<2x128xf32> to vector<2x32xf32>
    %135 = arith.negf %134 : vector<2x32xf32>
    %136 = math.exp %135 : vector<2x32xf32>
    %cst_60 = arith.constant 1.000000e+00 : f32
    %137 = vector.broadcast %cst_60 : f32 to vector<2x32xf32>
    %138 = arith.addf %137, %136 : vector<2x32xf32>
    %139 = arith.divf %137, %138 : vector<2x32xf32>
    %140 = vector.extract_strided_slice %127 {offsets = [0, 64], sizes = [2, 32], strides = [1, 1]} : vector<2x128xf32> to vector<2x32xf32>
    %141 = math.tanh %140 : vector<2x32xf32>
    %142 = vector.extract_strided_slice %127 {offsets = [0, 96], sizes = [2, 32], strides = [1, 1]} : vector<2x128xf32> to vector<2x32xf32>
    %143 = arith.negf %142 : vector<2x32xf32>
    %144 = math.exp %143 : vector<2x32xf32>
    %cst_61 = arith.constant 1.000000e+00 : f32
    %145 = vector.broadcast %cst_61 : f32 to vector<2x32xf32>
    %146 = arith.addf %145, %144 : vector<2x32xf32>
    %147 = arith.divf %145, %146 : vector<2x32xf32>
    %148 = arith.mulf %139, %86 : vector<2x32xf32>
    %149 = arith.mulf %133, %141 : vector<2x32xf32>
    %150 = arith.addf %148, %149 : vector<2x32xf32>
    %151 = math.tanh %150 : vector<2x32xf32>
    %152 = arith.mulf %147, %151 : vector<2x32xf32>
    %c2 = arith.constant 2 : index
    %c0_62 = arith.constant 0 : index
    %153 = vector.load %arg20[%c2, %c0_62] : memref<16x32xf32, #tpu.memory_space<vmem>>, vector<2x32xf32>
    tpu.vector_store %arg20[%c2, %c0_62], %152 {strides = array<i32>} : memref<16x32xf32, #tpu.memory_space<vmem>>, vector<2x32xf32>,
    %c2_63 = arith.constant 2 : index
    %c0_64 = arith.constant 0 : index
    %154 = vector.load %arg19[%c2_63, %c0_64] : memref<16x8xf32, #tpu.memory_space<vmem>>, vector<2x8xf32>
    tpu.vector_store %arg19[%c2_63, %c0_64], %112 {strides = array<i32>} : memref<16x8xf32, #tpu.memory_space<vmem>>, vector<2x8xf32>,
    %cst_65 = arith.constant dense<0.000000e+00> : vector<2x16xf32>
    %155 = tpu.matmul %152, %17, %cst_65 {dimension_numbers = #tpu.dot_dimension_numbers<[1], [0], [0], [1], [0, 0, 1, 1], [], []>} : vector<2x32xf32>, vector<32x16xf32>, vector<2x16xf32> -> vector<2x16xf32>
    %156 = vector.broadcast %18 : vector<1x16xf32> to vector<2x16xf32>
    %157 = arith.addf %155, %156 : vector<2x16xf32>
    %158 = vector.shape_cast %157 : vector<2x16xf32> to vector<2x1x16xf32>
    %159 = vector.broadcast %158 : vector<2x1x16xf32> to vector<2x8x16xf32>
    %160 = arith.addf %16, %159 : vector<2x8x16xf32>
    %161 = math.tanh %160 : vector<2x8x16xf32>
    %162 = vector.broadcast %20 : vector<1x1x16xf32> to vector<2x8x16xf32>
    %163 = arith.mulf %161, %162 : vector<2x8x16xf32>
    %cst_66 = arith.constant dense<0.000000e+00> : vector<2x8xf32>
    %164 = vector.multi_reduction <add>, %163, %cst_66 [2] : vector<2x8x16xf32> to vector<2x8xf32>
    %165 = vector.broadcast %21 : vector<1x1xf32> to vector<2x8xf32>
    %166 = arith.addf %164, %165 : vector<2x8xf32>
    %cst_67 = arith.constant dense<0xFF800000> : vector<2xf32>
    %167 = vector.multi_reduction <maximumf>, %166, %cst_67 [1] : vector<2x8xf32> to vector<2xf32>
    %168 = vector.shape_cast %167 : vector<2xf32> to vector<2x1xf32>
    %169 = vector.broadcast %168 : vector<2x1xf32> to vector<2x8xf32>
    %170 = arith.subf %166, %169 : vector<2x8xf32>
    %171 = math.exp %170 : vector<2x8xf32>
    %cst_68 = arith.constant dense<0.000000e+00> : vector<2xf32>
    %172 = vector.multi_reduction <add>, %171, %cst_68 [1] : vector<2x8xf32> to vector<2xf32>
    %173 = vector.shape_cast %172 : vector<2xf32> to vector<2x1xf32>
    %174 = tpu.reciprocal %173 {approx = true} : vector<2x1xf32> -> vector<2x1xf32>
    %175 = vector.broadcast %174 : vector<2x1xf32> to vector<2x8xf32>
    %176 = arith.mulf %171, %175 : vector<2x8xf32>
    %177 = vector.shape_cast %176 : vector<2x8xf32> to vector<2x8x1xf32>
    %178 = vector.broadcast %177 : vector<2x8x1xf32> to vector<2x8x32xf32>
    %179 = arith.mulf %0, %178 : vector<2x8x32xf32>
    %cst_69 = arith.constant dense<0.000000e+00> : vector<2x32xf32>
    %180 = vector.multi_reduction <add>, %179, %cst_69 [1] : vector<2x8x32xf32> to vector<2x32xf32>
    %c2_70 = arith.constant 2 : index
    %c0_71 = arith.constant 0 : index
    %c0_72 = arith.constant 0 : index
    %181 = vector.load %arg1[%c2_70, %c0_71, %c0_72] : memref<8x2x16xf32, #tpu.memory_space<vmem>>, vector<1x2x16xf32>
    %182 = vector.shape_cast %181 : vector<1x2x16xf32> to vector<2x16xf32>
    %cst_73 = arith.constant dense<0.000000e+00> : vector<2x128xf32>
    %183 = tpu.matmul %182, %22, %cst_73 {dimension_numbers = #tpu.dot_dimension_numbers<[1], [0], [0], [1], [0, 0, 1, 1], [], []>} : vector<2x16xf32>, vector<16x128xf32>, vector<2x128xf32> -> vector<2x128xf32>
    %cst_74 = arith.constant dense<0.000000e+00> : vector<2x128xf32>
    %184 = tpu.matmul %180, %23, %cst_74 {dimension_numbers = #tpu.dot_dimension_numbers<[1], [0], [0], [1], [0, 0, 1, 1], [], []>} : vector<2x32xf32>, vector<32x128xf32>, vector<2x128xf32> -> vector<2x128xf32>
    %185 = arith.addf %183, %184 : vector<2x128xf32>
    %186 = vector.broadcast %24 : vector<1x128xf32> to vector<2x128xf32>
    %187 = arith.addf %185, %186 : vector<2x128xf32>
    %cst_75 = arith.constant dense<0.000000e+00> : vector<2x128xf32>
    %188 = tpu.matmul %152, %25, %cst_75 {dimension_numbers = #tpu.dot_dimension_numbers<[1], [0], [0], [1], [0, 0, 1, 1], [], []>} : vector<2x32xf32>, vector<32x128xf32>, vector<2x128xf32> -> vector<2x128xf32>
    %189 = arith.addf %187, %188 : vector<2x128xf32>
    %190 = vector.broadcast %26 : vector<1x128xf32> to vector<2x128xf32>
    %191 = arith.addf %189, %190 : vector<2x128xf32>
    %192 = vector.extract_strided_slice %191 {offsets = [0, 0], sizes = [2, 32], strides = [1, 1]} : vector<2x128xf32> to vector<2x32xf32>
    %193 = arith.negf %192 : vector<2x32xf32>
    %194 = math.exp %193 : vector<2x32xf32>
    %cst_76 = arith.constant 1.000000e+00 : f32
    %195 = vector.broadcast %cst_76 : f32 to vector<2x32xf32>
    %196 = arith.addf %195, %194 : vector<2x32xf32>
    %197 = arith.divf %195, %196 : vector<2x32xf32>
    %198 = vector.extract_strided_slice %191 {offsets = [0, 32], sizes = [2, 32], strides = [1, 1]} : vector<2x128xf32> to vector<2x32xf32>
    %199 = arith.negf %198 : vector<2x32xf32>
    %200 = math.exp %199 : vector<2x32xf32>
    %cst_77 = arith.constant 1.000000e+00 : f32
    %201 = vector.broadcast %cst_77 : f32 to vector<2x32xf32>
    %202 = arith.addf %201, %200 : vector<2x32xf32>
    %203 = arith.divf %201, %202 : vector<2x32xf32>
    %204 = vector.extract_strided_slice %191 {offsets = [0, 64], sizes = [2, 32], strides = [1, 1]} : vector<2x128xf32> to vector<2x32xf32>
    %205 = math.tanh %204 : vector<2x32xf32>
    %206 = vector.extract_strided_slice %191 {offsets = [0, 96], sizes = [2, 32], strides = [1, 1]} : vector<2x128xf32> to vector<2x32xf32>
    %207 = arith.negf %206 : vector<2x32xf32>
    %208 = math.exp %207 : vector<2x32xf32>
    %cst_78 = arith.constant 1.000000e+00 : f32
    %209 = vector.broadcast %cst_78 : f32 to vector<2x32xf32>
    %210 = arith.addf %209, %208 : vector<2x32xf32>
    %211 = arith.divf %209, %210 : vector<2x32xf32>
    %212 = arith.mulf %203, %150 : vector<2x32xf32>
    %213 = arith.mulf %197, %205 : vector<2x32xf32>
    %214 = arith.addf %212, %213 : vector<2x32xf32>
    %215 = math.tanh %214 : vector<2x32xf32>
    %216 = arith.mulf %211, %215 : vector<2x32xf32>
    %c4 = arith.constant 4 : index
    %c0_79 = arith.constant 0 : index
    %217 = vector.load %arg20[%c4, %c0_79] : memref<16x32xf32, #tpu.memory_space<vmem>>, vector<2x32xf32>
    tpu.vector_store %arg20[%c4, %c0_79], %216 {strides = array<i32>} : memref<16x32xf32, #tpu.memory_space<vmem>>, vector<2x32xf32>,
    %c4_80 = arith.constant 4 : index
    %c0_81 = arith.constant 0 : index
    %218 = vector.load %arg19[%c4_80, %c0_81] : memref<16x8xf32, #tpu.memory_space<vmem>>, vector<2x8xf32>
    tpu.vector_store %arg19[%c4_80, %c0_81], %176 {strides = array<i32>} : memref<16x8xf32, #tpu.memory_space<vmem>>, vector<2x8xf32>,
    %cst_82 = arith.constant dense<0.000000e+00> : vector<2x16xf32>
    %219 = tpu.matmul %216, %17, %cst_82 {dimension_numbers = #tpu.dot_dimension_numbers<[1], [0], [0], [1], [0, 0, 1, 1], [], []>} : vector<2x32xf32>, vector<32x16xf32>, vector<2x16xf32> -> vector<2x16xf32>
    %220 = vector.broadcast %18 : vector<1x16xf32> to vector<2x16xf32>
    %221 = arith.addf %219, %220 : vector<2x16xf32>
    %222 = vector.shape_cast %221 : vector<2x16xf32> to vector<2x1x16xf32>
    %223 = vector.broadcast %222 : vector<2x1x16xf32> to vector<2x8x16xf32>
    %224 = arith.addf %16, %223 : vector<2x8x16xf32>
    %225 = math.tanh %224 : vector<2x8x16xf32>
    %226 = vector.broadcast %20 : vector<1x1x16xf32> to vector<2x8x16xf32>
    %227 = arith.mulf %225, %226 : vector<2x8x16xf32>
    %cst_83 = arith.constant dense<0.000000e+00> : vector<2x8xf32>
    %228 = vector.multi_reduction <add>, %227, %cst_83 [2] : vector<2x8x16xf32> to vector<2x8xf32>
    %229 = vector.broadcast %21 : vector<1x1xf32> to vector<2x8xf32>
    %230 = arith.addf %228, %229 : vector<2x8xf32>
    %cst_84 = arith.constant dense<0xFF800000> : vector<2xf32>
    %231 = vector.multi_reduction <maximumf>, %230, %cst_84 [1] : vector<2x8xf32> to vector<2xf32>
    %232 = vector.shape_cast %231 : vector<2xf32> to vector<2x1xf32>
    %233 = vector.broadcast %232 : vector<2x1xf32> to vector<2x8xf32>
    %234 = arith.subf %230, %233 : vector<2x8xf32>
    %235 = math.exp %234 : vector<2x8xf32>
    %cst_85 = arith.constant dense<0.000000e+00> : vector<2xf32>
    %236 = vector.multi_reduction <add>, %235, %cst_85 [1] : vector<2x8xf32> to vector<2xf32>
    %237 = vector.shape_cast %236 : vector<2xf32> to vector<2x1xf32>
    %238 = tpu.reciprocal %237 {approx = true} : vector<2x1xf32> -> vector<2x1xf32>
    %239 = vector.broadcast %238 : vector<2x1xf32> to vector<2x8xf32>
    %240 = arith.mulf %235, %239 : vector<2x8xf32>
    %241 = vector.shape_cast %240 : vector<2x8xf32> to vector<2x8x1xf32>
    %242 = vector.broadcast %241 : vector<2x8x1xf32> to vector<2x8x32xf32>
    %243 = arith.mulf %0, %242 : vector<2x8x32xf32>
    %cst_86 = arith.constant dense<0.000000e+00> : vector<2x32xf32>
    %244 = vector.multi_reduction <add>, %243, %cst_86 [1] : vector<2x8x32xf32> to vector<2x32xf32>
    %c3 = arith.constant 3 : index
    %c0_87 = arith.constant 0 : index
    %c0_88 = arith.constant 0 : index
    %245 = vector.load %arg1[%c3, %c0_87, %c0_88] : memref<8x2x16xf32, #tpu.memory_space<vmem>>, vector<1x2x16xf32>
    %246 = vector.shape_cast %245 : vector<1x2x16xf32> to vector<2x16xf32>
    %cst_89 = arith.constant dense<0.000000e+00> : vector<2x128xf32>
    %247 = tpu.matmul %246, %22, %cst_89 {dimension_numbers = #tpu.dot_dimension_numbers<[1], [0], [0], [1], [0, 0, 1, 1], [], []>} : vector<2x16xf32>, vector<16x128xf32>, vector<2x128xf32> -> vector<2x128xf32>
    %cst_90 = arith.constant dense<0.000000e+00> : vector<2x128xf32>
    %248 = tpu.matmul %244, %23, %cst_90 {dimension_numbers = #tpu.dot_dimension_numbers<[1], [0], [0], [1], [0, 0, 1, 1], [], []>} : vector<2x32xf32>, vector<32x128xf32>, vector<2x128xf32> -> vector<2x128xf32>
    %249 = arith.addf %247, %248 : vector<2x128xf32>
    %250 = vector.broadcast %24 : vector<1x128xf32> to vector<2x128xf32>
    %251 = arith.addf %249, %250 : vector<2x128xf32>
    %cst_91 = arith.constant dense<0.000000e+00> : vector<2x128xf32>
    %252 = tpu.matmul %216, %25, %cst_91 {dimension_numbers = #tpu.dot_dimension_numbers<[1], [0], [0], [1], [0, 0, 1, 1], [], []>} : vector<2x32xf32>, vector<32x128xf32>, vector<2x128xf32> -> vector<2x128xf32>
    %253 = arith.addf %251, %252 : vector<2x128xf32>
    %254 = vector.broadcast %26 : vector<1x128xf32> to vector<2x128xf32>
    %255 = arith.addf %253, %254 : vector<2x128xf32>
    %256 = vector.extract_strided_slice %255 {offsets = [0, 0], sizes = [2, 32], strides = [1, 1]} : vector<2x128xf32> to vector<2x32xf32>
    %257 = arith.negf %256 : vector<2x32xf32>
    %258 = math.exp %257 : vector<2x32xf32>
    %cst_92 = arith.constant 1.000000e+00 : f32
    %259 = vector.broadcast %cst_92 : f32 to vector<2x32xf32>
    %260 = arith.addf %259, %258 : vector<2x32xf32>
    %261 = arith.divf %259, %260 : vector<2x32xf32>
    %262 = vector.extract_strided_slice %255 {offsets = [0, 32], sizes = [2, 32], strides = [1, 1]} : vector<2x128xf32> to vector<2x32xf32>
    %263 = arith.negf %262 : vector<2x32xf32>
    %264 = math.exp %263 : vector<2x32xf32>
    %cst_93 = arith.constant 1.000000e+00 : f32
    %265 = vector.broadcast %cst_93 : f32 to vector<2x32xf32>
    %266 = arith.addf %265, %264 : vector<2x32xf32>
    %267 = arith.divf %265, %266 : vector<2x32xf32>
    %268 = vector.extract_strided_slice %255 {offsets = [0, 64], sizes = [2, 32], strides = [1, 1]} : vector<2x128xf32> to vector<2x32xf32>
    %269 = math.tanh %268 : vector<2x32xf32>
    %270 = vector.extract_strided_slice %255 {offsets = [0, 96], sizes = [2, 32], strides = [1, 1]} : vector<2x128xf32> to vector<2x32xf32>
    %271 = arith.negf %270 : vector<2x32xf32>
    %272 = math.exp %271 : vector<2x32xf32>
    %cst_94 = arith.constant 1.000000e+00 : f32
    %273 = vector.broadcast %cst_94 : f32 to vector<2x32xf32>
    %274 = arith.addf %273, %272 : vector<2x32xf32>
    %275 = arith.divf %273, %274 : vector<2x32xf32>
    %276 = arith.mulf %267, %214 : vector<2x32xf32>
    %277 = arith.mulf %261, %269 : vector<2x32xf32>
    %278 = arith.addf %276, %277 : vector<2x32xf32>
    %279 = math.tanh %278 : vector<2x32xf32>
    %280 = arith.mulf %275, %279 : vector<2x32xf32>
    %c6 = arith.constant 6 : index
    %c0_95 = arith.constant 0 : index
    %281 = vector.load %arg20[%c6, %c0_95] : memref<16x32xf32, #tpu.memory_space<vmem>>, vector<2x32xf32>
    tpu.vector_store %arg20[%c6, %c0_95], %280 {strides = array<i32>} : memref<16x32xf32, #tpu.memory_space<vmem>>, vector<2x32xf32>,
    %c6_96 = arith.constant 6 : index
    %c0_97 = arith.constant 0 : index
    %282 = vector.load %arg19[%c6_96, %c0_97] : memref<16x8xf32, #tpu.memory_space<vmem>>, vector<2x8xf32>
    tpu.vector_store %arg19[%c6_96, %c0_97], %240 {strides = array<i32>} : memref<16x8xf32, #tpu.memory_space<vmem>>, vector<2x8xf32>,
    %cst_98 = arith.constant dense<0.000000e+00> : vector<2x16xf32>
    %283 = tpu.matmul %280, %17, %cst_98 {dimension_numbers = #tpu.dot_dimension_numbers<[1], [0], [0], [1], [0, 0, 1, 1], [], []>} : vector<2x32xf32>, vector<32x16xf32>, vector<2x16xf32> -> vector<2x16xf32>
    %284 = vector.broadcast %18 : vector<1x16xf32> to vector<2x16xf32>
    %285 = arith.addf %283, %284 : vector<2x16xf32>
    %286 = vector.shape_cast %285 : vector<2x16xf32> to vector<2x1x16xf32>
    %287 = vector.broadcast %286 : vector<2x1x16xf32> to vector<2x8x16xf32>
    %288 = arith.addf %16, %287 : vector<2x8x16xf32>
    %289 = math.tanh %288 : vector<2x8x16xf32>
    %290 = vector.broadcast %20 : vector<1x1x16xf32> to vector<2x8x16xf32>
    %291 = arith.mulf %289, %290 : vector<2x8x16xf32>
    %cst_99 = arith.constant dense<0.000000e+00> : vector<2x8xf32>
    %292 = vector.multi_reduction <add>, %291, %cst_99 [2] : vector<2x8x16xf32> to vector<2x8xf32>
    %293 = vector.broadcast %21 : vector<1x1xf32> to vector<2x8xf32>
    %294 = arith.addf %292, %293 : vector<2x8xf32>
    %cst_100 = arith.constant dense<0xFF800000> : vector<2xf32>
    %295 = vector.multi_reduction <maximumf>, %294, %cst_100 [1] : vector<2x8xf32> to vector<2xf32>
    %296 = vector.shape_cast %295 : vector<2xf32> to vector<2x1xf32>
    %297 = vector.broadcast %296 : vector<2x1xf32> to vector<2x8xf32>
    %298 = arith.subf %294, %297 : vector<2x8xf32>
    %299 = math.exp %298 : vector<2x8xf32>
    %cst_101 = arith.constant dense<0.000000e+00> : vector<2xf32>
    %300 = vector.multi_reduction <add>, %299, %cst_101 [1] : vector<2x8xf32> to vector<2xf32>
    %301 = vector.shape_cast %300 : vector<2xf32> to vector<2x1xf32>
    %302 = tpu.reciprocal %301 {approx = true} : vector<2x1xf32> -> vector<2x1xf32>
    %303 = vector.broadcast %302 : vector<2x1xf32> to vector<2x8xf32>
    %304 = arith.mulf %299, %303 : vector<2x8xf32>
    %305 = vector.shape_cast %304 : vector<2x8xf32> to vector<2x8x1xf32>
    %306 = vector.broadcast %305 : vector<2x8x1xf32> to vector<2x8x32xf32>
    %307 = arith.mulf %0, %306 : vector<2x8x32xf32>
    %cst_102 = arith.constant dense<0.000000e+00> : vector<2x32xf32>
    %308 = vector.multi_reduction <add>, %307, %cst_102 [1] : vector<2x8x32xf32> to vector<2x32xf32>
    %c4_103 = arith.constant 4 : index
    %c0_104 = arith.constant 0 : index
    %c0_105 = arith.constant 0 : index
    %309 = vector.load %arg1[%c4_103, %c0_104, %c0_105] : memref<8x2x16xf32, #tpu.memory_space<vmem>>, vector<1x2x16xf32>
    %310 = vector.shape_cast %309 : vector<1x2x16xf32> to vector<2x16xf32>
    %cst_106 = arith.constant dense<0.000000e+00> : vector<2x128xf32>
    %311 = tpu.matmul %310, %22, %cst_106 {dimension_numbers = #tpu.dot_dimension_numbers<[1], [0], [0], [1], [0, 0, 1, 1], [], []>} : vector<2x16xf32>, vector<16x128xf32>, vector<2x128xf32> -> vector<2x128xf32>
    %cst_107 = arith.constant dense<0.000000e+00> : vector<2x128xf32>
    %312 = tpu.matmul %308, %23, %cst_107 {dimension_numbers = #tpu.dot_dimension_numbers<[1], [0], [0], [1], [0, 0, 1, 1], [], []>} : vector<2x32xf32>, vector<32x128xf32>, vector<2x128xf32> -> vector<2x128xf32>
    %313 = arith.addf %311, %312 : vector<2x128xf32>
    %314 = vector.broadcast %24 : vector<1x128xf32> to vector<2x128xf32>
    %315 = arith.addf %313, %314 : vector<2x128xf32>
    %cst_108 = arith.constant dense<0.000000e+00> : vector<2x128xf32>
    %316 = tpu.matmul %280, %25, %cst_108 {dimension_numbers = #tpu.dot_dimension_numbers<[1], [0], [0], [1], [0, 0, 1, 1], [], []>} : vector<2x32xf32>, vector<32x128xf32>, vector<2x128xf32> -> vector<2x128xf32>
    %317 = arith.addf %315, %316 : vector<2x128xf32>
    %318 = vector.broadcast %26 : vector<1x128xf32> to vector<2x128xf32>
    %319 = arith.addf %317, %318 : vector<2x128xf32>
    %320 = vector.extract_strided_slice %319 {offsets = [0, 0], sizes = [2, 32], strides = [1, 1]} : vector<2x128xf32> to vector<2x32xf32>
    %321 = arith.negf %320 : vector<2x32xf32>
    %322 = math.exp %321 : vector<2x32xf32>
    %cst_109 = arith.constant 1.000000e+00 : f32
    %323 = vector.broadcast %cst_109 : f32 to vector<2x32xf32>
    %324 = arith.addf %323, %322 : vector<2x32xf32>
    %325 = arith.divf %323, %324 : vector<2x32xf32>
    %326 = vector.extract_strided_slice %319 {offsets = [0, 32], sizes = [2, 32], strides = [1, 1]} : vector<2x128xf32> to vector<2x32xf32>
    %327 = arith.negf %326 : vector<2x32xf32>
    %328 = math.exp %327 : vector<2x32xf32>
    %cst_110 = arith.constant 1.000000e+00 : f32
    %329 = vector.broadcast %cst_110 : f32 to vector<2x32xf32>
    %330 = arith.addf %329, %328 : vector<2x32xf32>
    %331 = arith.divf %329, %330 : vector<2x32xf32>
    %332 = vector.extract_strided_slice %319 {offsets = [0, 64], sizes = [2, 32], strides = [1, 1]} : vector<2x128xf32> to vector<2x32xf32>
    %333 = math.tanh %332 : vector<2x32xf32>
    %334 = vector.extract_strided_slice %319 {offsets = [0, 96], sizes = [2, 32], strides = [1, 1]} : vector<2x128xf32> to vector<2x32xf32>
    %335 = arith.negf %334 : vector<2x32xf32>
    %336 = math.exp %335 : vector<2x32xf32>
    %cst_111 = arith.constant 1.000000e+00 : f32
    %337 = vector.broadcast %cst_111 : f32 to vector<2x32xf32>
    %338 = arith.addf %337, %336 : vector<2x32xf32>
    %339 = arith.divf %337, %338 : vector<2x32xf32>
    %340 = arith.mulf %331, %278 : vector<2x32xf32>
    %341 = arith.mulf %325, %333 : vector<2x32xf32>
    %342 = arith.addf %340, %341 : vector<2x32xf32>
    %343 = math.tanh %342 : vector<2x32xf32>
    %344 = arith.mulf %339, %343 : vector<2x32xf32>
    %c8 = arith.constant 8 : index
    %c0_112 = arith.constant 0 : index
    %345 = vector.load %arg20[%c8, %c0_112] : memref<16x32xf32, #tpu.memory_space<vmem>>, vector<2x32xf32>
    tpu.vector_store %arg20[%c8, %c0_112], %344 {strides = array<i32>} : memref<16x32xf32, #tpu.memory_space<vmem>>, vector<2x32xf32>,
    %c8_113 = arith.constant 8 : index
    %c0_114 = arith.constant 0 : index
    %346 = vector.load %arg19[%c8_113, %c0_114] : memref<16x8xf32, #tpu.memory_space<vmem>>, vector<2x8xf32>
    tpu.vector_store %arg19[%c8_113, %c0_114], %304 {strides = array<i32>} : memref<16x8xf32, #tpu.memory_space<vmem>>, vector<2x8xf32>,
    %cst_115 = arith.constant dense<0.000000e+00> : vector<2x16xf32>
    %347 = tpu.matmul %344, %17, %cst_115 {dimension_numbers = #tpu.dot_dimension_numbers<[1], [0], [0], [1], [0, 0, 1, 1], [], []>} : vector<2x32xf32>, vector<32x16xf32>, vector<2x16xf32> -> vector<2x16xf32>
    %348 = vector.broadcast %18 : vector<1x16xf32> to vector<2x16xf32>
    %349 = arith.addf %347, %348 : vector<2x16xf32>
    %350 = vector.shape_cast %349 : vector<2x16xf32> to vector<2x1x16xf32>
    %351 = vector.broadcast %350 : vector<2x1x16xf32> to vector<2x8x16xf32>
    %352 = arith.addf %16, %351 : vector<2x8x16xf32>
    %353 = math.tanh %352 : vector<2x8x16xf32>
    %354 = vector.broadcast %20 : vector<1x1x16xf32> to vector<2x8x16xf32>
    %355 = arith.mulf %353, %354 : vector<2x8x16xf32>
    %cst_116 = arith.constant dense<0.000000e+00> : vector<2x8xf32>
    %356 = vector.multi_reduction <add>, %355, %cst_116 [2] : vector<2x8x16xf32> to vector<2x8xf32>
    %357 = vector.broadcast %21 : vector<1x1xf32> to vector<2x8xf32>
    %358 = arith.addf %356, %357 : vector<2x8xf32>
    %cst_117 = arith.constant dense<0xFF800000> : vector<2xf32>
    %359 = vector.multi_reduction <maximumf>, %358, %cst_117 [1] : vector<2x8xf32> to vector<2xf32>
    %360 = vector.shape_cast %359 : vector<2xf32> to vector<2x1xf32>
    %361 = vector.broadcast %360 : vector<2x1xf32> to vector<2x8xf32>
    %362 = arith.subf %358, %361 : vector<2x8xf32>
    %363 = math.exp %362 : vector<2x8xf32>
    %cst_118 = arith.constant dense<0.000000e+00> : vector<2xf32>
    %364 = vector.multi_reduction <add>, %363, %cst_118 [1] : vector<2x8xf32> to vector<2xf32>
    %365 = vector.shape_cast %364 : vector<2xf32> to vector<2x1xf32>
    %366 = tpu.reciprocal %365 {approx = true} : vector<2x1xf32> -> vector<2x1xf32>
    %367 = vector.broadcast %366 : vector<2x1xf32> to vector<2x8xf32>
    %368 = arith.mulf %363, %367 : vector<2x8xf32>
    %369 = vector.shape_cast %368 : vector<2x8xf32> to vector<2x8x1xf32>
    %370 = vector.broadcast %369 : vector<2x8x1xf32> to vector<2x8x32xf32>
    %371 = arith.mulf %0, %370 : vector<2x8x32xf32>
    %cst_119 = arith.constant dense<0.000000e+00> : vector<2x32xf32>
    %372 = vector.multi_reduction <add>, %371, %cst_119 [1] : vector<2x8x32xf32> to vector<2x32xf32>
    %c5 = arith.constant 5 : index
    %c0_120 = arith.constant 0 : index
    %c0_121 = arith.constant 0 : index
    %373 = vector.load %arg1[%c5, %c0_120, %c0_121] : memref<8x2x16xf32, #tpu.memory_space<vmem>>, vector<1x2x16xf32>
    %374 = vector.shape_cast %373 : vector<1x2x16xf32> to vector<2x16xf32>
    %cst_122 = arith.constant dense<0.000000e+00> : vector<2x128xf32>
    %375 = tpu.matmul %374, %22, %cst_122 {dimension_numbers = #tpu.dot_dimension_numbers<[1], [0], [0], [1], [0, 0, 1, 1], [], []>} : vector<2x16xf32>, vector<16x128xf32>, vector<2x128xf32> -> vector<2x128xf32>
    %cst_123 = arith.constant dense<0.000000e+00> : vector<2x128xf32>
    %376 = tpu.matmul %372, %23, %cst_123 {dimension_numbers = #tpu.dot_dimension_numbers<[1], [0], [0], [1], [0, 0, 1, 1], [], []>} : vector<2x32xf32>, vector<32x128xf32>, vector<2x128xf32> -> vector<2x128xf32>
    %377 = arith.addf %375, %376 : vector<2x128xf32>
    %378 = vector.broadcast %24 : vector<1x128xf32> to vector<2x128xf32>
    %379 = arith.addf %377, %378 : vector<2x128xf32>
    %cst_124 = arith.constant dense<0.000000e+00> : vector<2x128xf32>
    %380 = tpu.matmul %344, %25, %cst_124 {dimension_numbers = #tpu.dot_dimension_numbers<[1], [0], [0], [1], [0, 0, 1, 1], [], []>} : vector<2x32xf32>, vector<32x128xf32>, vector<2x128xf32> -> vector<2x128xf32>
    %381 = arith.addf %379, %380 : vector<2x128xf32>
    %382 = vector.broadcast %26 : vector<1x128xf32> to vector<2x128xf32>
    %383 = arith.addf %381, %382 : vector<2x128xf32>
    %384 = vector.extract_strided_slice %383 {offsets = [0, 0], sizes = [2, 32], strides = [1, 1]} : vector<2x128xf32> to vector<2x32xf32>
    %385 = arith.negf %384 : vector<2x32xf32>
    %386 = math.exp %385 : vector<2x32xf32>
    %cst_125 = arith.constant 1.000000e+00 : f32
    %387 = vector.broadcast %cst_125 : f32 to vector<2x32xf32>
    %388 = arith.addf %387, %386 : vector<2x32xf32>
    %389 = arith.divf %387, %388 : vector<2x32xf32>
    %390 = vector.extract_strided_slice %383 {offsets = [0, 32], sizes = [2, 32], strides = [1, 1]} : vector<2x128xf32> to vector<2x32xf32>
    %391 = arith.negf %390 : vector<2x32xf32>
    %392 = math.exp %391 : vector<2x32xf32>
    %cst_126 = arith.constant 1.000000e+00 : f32
    %393 = vector.broadcast %cst_126 : f32 to vector<2x32xf32>
    %394 = arith.addf %393, %392 : vector<2x32xf32>
    %395 = arith.divf %393, %394 : vector<2x32xf32>
    %396 = vector.extract_strided_slice %383 {offsets = [0, 64], sizes = [2, 32], strides = [1, 1]} : vector<2x128xf32> to vector<2x32xf32>
    %397 = math.tanh %396 : vector<2x32xf32>
    %398 = vector.extract_strided_slice %383 {offsets = [0, 96], sizes = [2, 32], strides = [1, 1]} : vector<2x128xf32> to vector<2x32xf32>
    %399 = arith.negf %398 : vector<2x32xf32>
    %400 = math.exp %399 : vector<2x32xf32>
    %cst_127 = arith.constant 1.000000e+00 : f32
    %401 = vector.broadcast %cst_127 : f32 to vector<2x32xf32>
    %402 = arith.addf %401, %400 : vector<2x32xf32>
    %403 = arith.divf %401, %402 : vector<2x32xf32>
    %404 = arith.mulf %395, %342 : vector<2x32xf32>
    %405 = arith.mulf %389, %397 : vector<2x32xf32>
    %406 = arith.addf %404, %405 : vector<2x32xf32>
    %407 = math.tanh %406 : vector<2x32xf32>
    %408 = arith.mulf %403, %407 : vector<2x32xf32>
    %c10 = arith.constant 10 : index
    %c0_128 = arith.constant 0 : index
    %409 = vector.load %arg20[%c10, %c0_128] : memref<16x32xf32, #tpu.memory_space<vmem>>, vector<2x32xf32>
    tpu.vector_store %arg20[%c10, %c0_128], %408 {strides = array<i32>} : memref<16x32xf32, #tpu.memory_space<vmem>>, vector<2x32xf32>,
    %c10_129 = arith.constant 10 : index
    %c0_130 = arith.constant 0 : index
    %410 = vector.load %arg19[%c10_129, %c0_130] : memref<16x8xf32, #tpu.memory_space<vmem>>, vector<2x8xf32>
    tpu.vector_store %arg19[%c10_129, %c0_130], %368 {strides = array<i32>} : memref<16x8xf32, #tpu.memory_space<vmem>>, vector<2x8xf32>,
    %cst_131 = arith.constant dense<0.000000e+00> : vector<2x16xf32>
    %411 = tpu.matmul %408, %17, %cst_131 {dimension_numbers = #tpu.dot_dimension_numbers<[1], [0], [0], [1], [0, 0, 1, 1], [], []>} : vector<2x32xf32>, vector<32x16xf32>, vector<2x16xf32> -> vector<2x16xf32>
    %412 = vector.broadcast %18 : vector<1x16xf32> to vector<2x16xf32>
    %413 = arith.addf %411, %412 : vector<2x16xf32>
    %414 = vector.shape_cast %413 : vector<2x16xf32> to vector<2x1x16xf32>
    %415 = vector.broadcast %414 : vector<2x1x16xf32> to vector<2x8x16xf32>
    %416 = arith.addf %16, %415 : vector<2x8x16xf32>
    %417 = math.tanh %416 : vector<2x8x16xf32>
    %418 = vector.broadcast %20 : vector<1x1x16xf32> to vector<2x8x16xf32>
    %419 = arith.mulf %417, %418 : vector<2x8x16xf32>
    %cst_132 = arith.constant dense<0.000000e+00> : vector<2x8xf32>
    %420 = vector.multi_reduction <add>, %419, %cst_132 [2] : vector<2x8x16xf32> to vector<2x8xf32>
    %421 = vector.broadcast %21 : vector<1x1xf32> to vector<2x8xf32>
    %422 = arith.addf %420, %421 : vector<2x8xf32>
    %cst_133 = arith.constant dense<0xFF800000> : vector<2xf32>
    %423 = vector.multi_reduction <maximumf>, %422, %cst_133 [1] : vector<2x8xf32> to vector<2xf32>
    %424 = vector.shape_cast %423 : vector<2xf32> to vector<2x1xf32>
    %425 = vector.broadcast %424 : vector<2x1xf32> to vector<2x8xf32>
    %426 = arith.subf %422, %425 : vector<2x8xf32>
    %427 = math.exp %426 : vector<2x8xf32>
    %cst_134 = arith.constant dense<0.000000e+00> : vector<2xf32>
    %428 = vector.multi_reduction <add>, %427, %cst_134 [1] : vector<2x8xf32> to vector<2xf32>
    %429 = vector.shape_cast %428 : vector<2xf32> to vector<2x1xf32>
    %430 = tpu.reciprocal %429 {approx = true} : vector<2x1xf32> -> vector<2x1xf32>
    %431 = vector.broadcast %430 : vector<2x1xf32> to vector<2x8xf32>
    %432 = arith.mulf %427, %431 : vector<2x8xf32>
    %433 = vector.shape_cast %432 : vector<2x8xf32> to vector<2x8x1xf32>
    %434 = vector.broadcast %433 : vector<2x8x1xf32> to vector<2x8x32xf32>
    %435 = arith.mulf %0, %434 : vector<2x8x32xf32>
    %cst_135 = arith.constant dense<0.000000e+00> : vector<2x32xf32>
    %436 = vector.multi_reduction <add>, %435, %cst_135 [1] : vector<2x8x32xf32> to vector<2x32xf32>
    %c6_136 = arith.constant 6 : index
    %c0_137 = arith.constant 0 : index
    %c0_138 = arith.constant 0 : index
    %437 = vector.load %arg1[%c6_136, %c0_137, %c0_138] : memref<8x2x16xf32, #tpu.memory_space<vmem>>, vector<1x2x16xf32>
    %438 = vector.shape_cast %437 : vector<1x2x16xf32> to vector<2x16xf32>
    %cst_139 = arith.constant dense<0.000000e+00> : vector<2x128xf32>
    %439 = tpu.matmul %438, %22, %cst_139 {dimension_numbers = #tpu.dot_dimension_numbers<[1], [0], [0], [1], [0, 0, 1, 1], [], []>} : vector<2x16xf32>, vector<16x128xf32>, vector<2x128xf32> -> vector<2x128xf32>
    %cst_140 = arith.constant dense<0.000000e+00> : vector<2x128xf32>
    %440 = tpu.matmul %436, %23, %cst_140 {dimension_numbers = #tpu.dot_dimension_numbers<[1], [0], [0], [1], [0, 0, 1, 1], [], []>} : vector<2x32xf32>, vector<32x128xf32>, vector<2x128xf32> -> vector<2x128xf32>
    %441 = arith.addf %439, %440 : vector<2x128xf32>
    %442 = vector.broadcast %24 : vector<1x128xf32> to vector<2x128xf32>
    %443 = arith.addf %441, %442 : vector<2x128xf32>
    %cst_141 = arith.constant dense<0.000000e+00> : vector<2x128xf32>
    %444 = tpu.matmul %408, %25, %cst_141 {dimension_numbers = #tpu.dot_dimension_numbers<[1], [0], [0], [1], [0, 0, 1, 1], [], []>} : vector<2x32xf32>, vector<32x128xf32>, vector<2x128xf32> -> vector<2x128xf32>
    %445 = arith.addf %443, %444 : vector<2x128xf32>
    %446 = vector.broadcast %26 : vector<1x128xf32> to vector<2x128xf32>
    %447 = arith.addf %445, %446 : vector<2x128xf32>
    %448 = vector.extract_strided_slice %447 {offsets = [0, 0], sizes = [2, 32], strides = [1, 1]} : vector<2x128xf32> to vector<2x32xf32>
    %449 = arith.negf %448 : vector<2x32xf32>
    %450 = math.exp %449 : vector<2x32xf32>
    %cst_142 = arith.constant 1.000000e+00 : f32
    %451 = vector.broadcast %cst_142 : f32 to vector<2x32xf32>
    %452 = arith.addf %451, %450 : vector<2x32xf32>
    %453 = arith.divf %451, %452 : vector<2x32xf32>
    %454 = vector.extract_strided_slice %447 {offsets = [0, 32], sizes = [2, 32], strides = [1, 1]} : vector<2x128xf32> to vector<2x32xf32>
    %455 = arith.negf %454 : vector<2x32xf32>
    %456 = math.exp %455 : vector<2x32xf32>
    %cst_143 = arith.constant 1.000000e+00 : f32
    %457 = vector.broadcast %cst_143 : f32 to vector<2x32xf32>
    %458 = arith.addf %457, %456 : vector<2x32xf32>
    %459 = arith.divf %457, %458 : vector<2x32xf32>
    %460 = vector.extract_strided_slice %447 {offsets = [0, 64], sizes = [2, 32], strides = [1, 1]} : vector<2x128xf32> to vector<2x32xf32>
    %461 = math.tanh %460 : vector<2x32xf32>
    %462 = vector.extract_strided_slice %447 {offsets = [0, 96], sizes = [2, 32], strides = [1, 1]} : vector<2x128xf32> to vector<2x32xf32>
    %463 = arith.negf %462 : vector<2x32xf32>
    %464 = math.exp %463 : vector<2x32xf32>
    %cst_144 = arith.constant 1.000000e+00 : f32
    %465 = vector.broadcast %cst_144 : f32 to vector<2x32xf32>
    %466 = arith.addf %465, %464 : vector<2x32xf32>
    %467 = arith.divf %465, %466 : vector<2x32xf32>
    %468 = arith.mulf %459, %406 : vector<2x32xf32>
    %469 = arith.mulf %453, %461 : vector<2x32xf32>
    %470 = arith.addf %468, %469 : vector<2x32xf32>
    %471 = math.tanh %470 : vector<2x32xf32>
    %472 = arith.mulf %467, %471 : vector<2x32xf32>
    %c12 = arith.constant 12 : index
    %c0_145 = arith.constant 0 : index
    %473 = vector.load %arg20[%c12, %c0_145] : memref<16x32xf32, #tpu.memory_space<vmem>>, vector<2x32xf32>
    tpu.vector_store %arg20[%c12, %c0_145], %472 {strides = array<i32>} : memref<16x32xf32, #tpu.memory_space<vmem>>, vector<2x32xf32>,
    %c12_146 = arith.constant 12 : index
    %c0_147 = arith.constant 0 : index
    %474 = vector.load %arg19[%c12_146, %c0_147] : memref<16x8xf32, #tpu.memory_space<vmem>>, vector<2x8xf32>
    tpu.vector_store %arg19[%c12_146, %c0_147], %432 {strides = array<i32>} : memref<16x8xf32, #tpu.memory_space<vmem>>, vector<2x8xf32>,
    %cst_148 = arith.constant dense<0.000000e+00> : vector<2x16xf32>
    %475 = tpu.matmul %472, %17, %cst_148 {dimension_numbers = #tpu.dot_dimension_numbers<[1], [0], [0], [1], [0, 0, 1, 1], [], []>} : vector<2x32xf32>, vector<32x16xf32>, vector<2x16xf32> -> vector<2x16xf32>
    %476 = vector.broadcast %18 : vector<1x16xf32> to vector<2x16xf32>
    %477 = arith.addf %475, %476 : vector<2x16xf32>
    %478 = vector.shape_cast %477 : vector<2x16xf32> to vector<2x1x16xf32>
    %479 = vector.broadcast %478 : vector<2x1x16xf32> to vector<2x8x16xf32>
    %480 = arith.addf %16, %479 : vector<2x8x16xf32>
    %481 = math.tanh %480 : vector<2x8x16xf32>
    %482 = vector.broadcast %20 : vector<1x1x16xf32> to vector<2x8x16xf32>
    %483 = arith.mulf %481, %482 : vector<2x8x16xf32>
    %cst_149 = arith.constant dense<0.000000e+00> : vector<2x8xf32>
    %484 = vector.multi_reduction <add>, %483, %cst_149 [2] : vector<2x8x16xf32> to vector<2x8xf32>
    %485 = vector.broadcast %21 : vector<1x1xf32> to vector<2x8xf32>
    %486 = arith.addf %484, %485 : vector<2x8xf32>
    %cst_150 = arith.constant dense<0xFF800000> : vector<2xf32>
    %487 = vector.multi_reduction <maximumf>, %486, %cst_150 [1] : vector<2x8xf32> to vector<2xf32>
    %488 = vector.shape_cast %487 : vector<2xf32> to vector<2x1xf32>
    %489 = vector.broadcast %488 : vector<2x1xf32> to vector<2x8xf32>
    %490 = arith.subf %486, %489 : vector<2x8xf32>
    %491 = math.exp %490 : vector<2x8xf32>
    %cst_151 = arith.constant dense<0.000000e+00> : vector<2xf32>
    %492 = vector.multi_reduction <add>, %491, %cst_151 [1] : vector<2x8xf32> to vector<2xf32>
    %493 = vector.shape_cast %492 : vector<2xf32> to vector<2x1xf32>
    %494 = tpu.reciprocal %493 {approx = true} : vector<2x1xf32> -> vector<2x1xf32>
    %495 = vector.broadcast %494 : vector<2x1xf32> to vector<2x8xf32>
    %496 = arith.mulf %491, %495 : vector<2x8xf32>
    %497 = vector.shape_cast %496 : vector<2x8xf32> to vector<2x8x1xf32>
    %498 = vector.broadcast %497 : vector<2x8x1xf32> to vector<2x8x32xf32>
    %499 = arith.mulf %0, %498 : vector<2x8x32xf32>
    %cst_152 = arith.constant dense<0.000000e+00> : vector<2x32xf32>
    %500 = vector.multi_reduction <add>, %499, %cst_152 [1] : vector<2x8x32xf32> to vector<2x32xf32>
    %c7 = arith.constant 7 : index
    %c0_153 = arith.constant 0 : index
    %c0_154 = arith.constant 0 : index
    %501 = vector.load %arg1[%c7, %c0_153, %c0_154] : memref<8x2x16xf32, #tpu.memory_space<vmem>>, vector<1x2x16xf32>
    %502 = vector.shape_cast %501 : vector<1x2x16xf32> to vector<2x16xf32>
    %cst_155 = arith.constant dense<0.000000e+00> : vector<2x128xf32>
    %503 = tpu.matmul %502, %22, %cst_155 {dimension_numbers = #tpu.dot_dimension_numbers<[1], [0], [0], [1], [0, 0, 1, 1], [], []>} : vector<2x16xf32>, vector<16x128xf32>, vector<2x128xf32> -> vector<2x128xf32>
    %cst_156 = arith.constant dense<0.000000e+00> : vector<2x128xf32>
    %504 = tpu.matmul %500, %23, %cst_156 {dimension_numbers = #tpu.dot_dimension_numbers<[1], [0], [0], [1], [0, 0, 1, 1], [], []>} : vector<2x32xf32>, vector<32x128xf32>, vector<2x128xf32> -> vector<2x128xf32>
    %505 = arith.addf %503, %504 : vector<2x128xf32>
    %506 = vector.broadcast %24 : vector<1x128xf32> to vector<2x128xf32>
    %507 = arith.addf %505, %506 : vector<2x128xf32>
    %cst_157 = arith.constant dense<0.000000e+00> : vector<2x128xf32>
    %508 = tpu.matmul %472, %25, %cst_157 {dimension_numbers = #tpu.dot_dimension_numbers<[1], [0], [0], [1], [0, 0, 1, 1], [], []>} : vector<2x32xf32>, vector<32x128xf32>, vector<2x128xf32> -> vector<2x128xf32>
    %509 = arith.addf %507, %508 : vector<2x128xf32>
    %510 = vector.broadcast %26 : vector<1x128xf32> to vector<2x128xf32>
    %511 = arith.addf %509, %510 : vector<2x128xf32>
    %512 = vector.extract_strided_slice %511 {offsets = [0, 0], sizes = [2, 32], strides = [1, 1]} : vector<2x128xf32> to vector<2x32xf32>
    %513 = arith.negf %512 : vector<2x32xf32>
    %514 = math.exp %513 : vector<2x32xf32>
    %cst_158 = arith.constant 1.000000e+00 : f32
    %515 = vector.broadcast %cst_158 : f32 to vector<2x32xf32>
    %516 = arith.addf %515, %514 : vector<2x32xf32>
    %517 = arith.divf %515, %516 : vector<2x32xf32>
    %518 = vector.extract_strided_slice %511 {offsets = [0, 32], sizes = [2, 32], strides = [1, 1]} : vector<2x128xf32> to vector<2x32xf32>
    %519 = arith.negf %518 : vector<2x32xf32>
    %520 = math.exp %519 : vector<2x32xf32>
    %cst_159 = arith.constant 1.000000e+00 : f32
    %521 = vector.broadcast %cst_159 : f32 to vector<2x32xf32>
    %522 = arith.addf %521, %520 : vector<2x32xf32>
    %523 = arith.divf %521, %522 : vector<2x32xf32>
    %524 = vector.extract_strided_slice %511 {offsets = [0, 64], sizes = [2, 32], strides = [1, 1]} : vector<2x128xf32> to vector<2x32xf32>
    %525 = math.tanh %524 : vector<2x32xf32>
    %526 = vector.extract_strided_slice %511 {offsets = [0, 96], sizes = [2, 32], strides = [1, 1]} : vector<2x128xf32> to vector<2x32xf32>
    %527 = arith.negf %526 : vector<2x32xf32>
    %528 = math.exp %527 : vector<2x32xf32>
    %cst_160 = arith.constant 1.000000e+00 : f32
    %529 = vector.broadcast %cst_160 : f32 to vector<2x32xf32>
    %530 = arith.addf %529, %528 : vector<2x32xf32>
    %531 = arith.divf %529, %530 : vector<2x32xf32>
    %532 = arith.mulf %523, %470 : vector<2x32xf32>
    %533 = arith.mulf %517, %525 : vector<2x32xf32>
    %534 = arith.addf %532, %533 : vector<2x32xf32>
    %535 = math.tanh %534 : vector<2x32xf32>
    %536 = arith.mulf %531, %535 : vector<2x32xf32>
    %c14 = arith.constant 14 : index
    %c0_161 = arith.constant 0 : index
    %537 = vector.load %arg20[%c14, %c0_161] : memref<16x32xf32, #tpu.memory_space<vmem>>, vector<2x32xf32>
    tpu.vector_store %arg20[%c14, %c0_161], %536 {strides = array<i32>} : memref<16x32xf32, #tpu.memory_space<vmem>>, vector<2x32xf32>,
    %c14_162 = arith.constant 14 : index
    %c0_163 = arith.constant 0 : index
    %538 = vector.load %arg19[%c14_162, %c0_163] : memref<16x8xf32, #tpu.memory_space<vmem>>, vector<2x8xf32>
    tpu.vector_store %arg19[%c14_162, %c0_163], %496 {strides = array<i32>} : memref<16x8xf32, #tpu.memory_space<vmem>>, vector<2x8xf32>,
    %c0_164 = arith.constant 0 : index
    %c0_165 = arith.constant 0 : index
    %539 = vector.load %arg20[%c0_164, %c0_165] : memref<16x32xf32, #tpu.memory_space<vmem>>, vector<16x32xf32>
    %c0_166 = arith.constant 0 : index
    %c0_167 = arith.constant 0 : index
    %540 = vector.load %arg16[%c0_166, %c0_167] : memref<32x64xf32, #tpu.memory_space<vmem>>, vector<32x64xf32>
    %cst_168 = arith.constant dense<0.000000e+00> : vector<16x64xf32>
    %541 = tpu.matmul %539, %540, %cst_168 {dimension_numbers = #tpu.dot_dimension_numbers<[1], [0], [0], [1], [0, 0, 1, 1], [], []>} : vector<16x32xf32>, vector<32x64xf32>, vector<16x64xf32> -> vector<16x64xf32>
    %c0_169 = arith.constant 0 : index
    %c0_170 = arith.constant 0 : index
    %542 = vector.load %arg17[%c0_169, %c0_170] : memref<1x64xf32, #tpu.memory_space<vmem>>, vector<1x64xf32>
    %543 = vector.broadcast %542 : vector<1x64xf32> to vector<16x64xf32>
    %544 = arith.addf %541, %543 : vector<16x64xf32>
    %c0_171 = arith.constant 0 : index
    %c0_172 = arith.constant 0 : index
    %545 = vector.load %arg18[%c0_171, %c0_172] : memref<16x64xf32, #tpu.memory_space<vmem>>, vector<16x64xf32>
    tpu.vector_store %arg18[%c0_171, %c0_172], %544 {strides = array<i32>} : memref<16x64xf32, #tpu.memory_space<vmem>>, vector<16x64xf32>,
    return
  }
  func.func @transform_0(%arg0: i32) -> (i32, i32, i32) {
    %c0_i32 = arith.constant 0 : i32
    %c0_i32_0 = arith.constant 0 : i32
    %c0_i32_1 = arith.constant 0 : i32
    %c0_i32_2 = arith.constant 0 : i32
    return %c0_i32, %c0_i32_0, %c0_i32_1 : i32, i32, i32
  }
  func.func @transform_1(%arg0: i32) -> (i32, i32, i32) {
    %c0_i32 = arith.constant 0 : i32
    %c0_i32_0 = arith.constant 0 : i32
    %c0_i32_1 = arith.constant 0 : i32
    %c0_i32_2 = arith.constant 0 : i32
    return %c0_i32, %c0_i32_0, %c0_i32_1 : i32, i32, i32
  }
  func.func @transform_2(%arg0: i32) -> (i32, i32) {
    %c0_i32 = arith.constant 0 : i32
    %c0_i32_0 = arith.constant 0 : i32
    %c0_i32_1 = arith.constant 0 : i32
    return %c0_i32, %c0_i32_0 : i32, i32
  }
  func.func @transform_3(%arg0: i32) -> (i32, i32) {
    %c0_i32 = arith.constant 0 : i32
    %c0_i32_0 = arith.constant 0 : i32
    %c0_i32_1 = arith.constant 0 : i32
    return %c0_i32, %c0_i32_0 : i32, i32
  }
  func.func @transform_4(%arg0: i32) -> (i32, i32) {
    %c0_i32 = arith.constant 0 : i32
    %c0_i32_0 = arith.constant 0 : i32
    %c0_i32_1 = arith.constant 0 : i32
    return %c0_i32, %c0_i32_0 : i32, i32
  }
  func.func @transform_5(%arg0: i32) -> (i32, i32) {
    %c0_i32 = arith.constant 0 : i32
    %c0_i32_0 = arith.constant 0 : i32
    %c0_i32_1 = arith.constant 0 : i32
    return %c0_i32, %c0_i32_0 : i32, i32
  }
  func.func @transform_6(%arg0: i32) -> (i32, i32) {
    %c0_i32 = arith.constant 0 : i32
    %c0_i32_0 = arith.constant 0 : i32
    %c0_i32_1 = arith.constant 0 : i32
    return %c0_i32, %c0_i32_0 : i32, i32
  }
  func.func @transform_7(%arg0: i32) -> (i32, i32) {
    %c0_i32 = arith.constant 0 : i32
    %c0_i32_0 = arith.constant 0 : i32
    %c0_i32_1 = arith.constant 0 : i32
    return %c0_i32, %c0_i32_0 : i32, i32
  }
  func.func @transform_8(%arg0: i32) -> (i32, i32) {
    %c0_i32 = arith.constant 0 : i32
    %c0_i32_0 = arith.constant 0 : i32
    %c0_i32_1 = arith.constant 0 : i32
    return %c0_i32, %c0_i32_0 : i32, i32
  }
  func.func @transform_9(%arg0: i32) -> (i32, i32) {
    %c0_i32 = arith.constant 0 : i32
    %c0_i32_0 = arith.constant 0 : i32
    %c0_i32_1 = arith.constant 0 : i32
    return %c0_i32, %c0_i32_0 : i32, i32
  }
  func.func @transform_10(%arg0: i32) -> (i32, i32) {
    %c0_i32 = arith.constant 0 : i32
    %c0_i32_0 = arith.constant 0 : i32
    %c0_i32_1 = arith.constant 0 : i32
    return %c0_i32, %c0_i32_0 : i32, i32
  }
  func.func @transform_11(%arg0: i32) -> (i32, i32) {
    %c0_i32 = arith.constant 0 : i32
    %c0_i32_0 = arith.constant 0 : i32
    %c0_i32_1 = arith.constant 0 : i32
    return %c0_i32, %c0_i32_0 : i32, i32
  }
  func.func @transform_12(%arg0: i32) -> (i32, i32) {
    %c0_i32 = arith.constant 0 : i32
    %c0_i32_0 = arith.constant 0 : i32
    %c0_i32_1 = arith.constant 0 : i32
    return %c0_i32, %c0_i32_0 : i32, i32
  }
  func.func @transform_13(%arg0: i32) -> (i32, i32) {
    %c0_i32 = arith.constant 0 : i32
    %c0_i32_0 = arith.constant 0 : i32
    %c0_i32_1 = arith.constant 0 : i32
    return %c0_i32, %c0_i32_0 : i32, i32
  }
  func.func @transform_14(%arg0: i32) -> (i32, i32) {
    %c0_i32 = arith.constant 0 : i32
    %c0_i32_0 = arith.constant 0 : i32
    %c0_i32_1 = arith.constant 0 : i32
    return %c0_i32, %c0_i32_0 : i32, i32
  }
  func.func @transform_15(%arg0: i32) -> (i32, i32) {
    %c0_i32 = arith.constant 0 : i32
    %c0_i32_0 = arith.constant 0 : i32
    %c0_i32_1 = arith.constant 0 : i32
    return %c0_i32, %c0_i32_0 : i32, i32
  }
  func.func @transform_16(%arg0: i32) -> (i32, i32) {
    %c0_i32 = arith.constant 0 : i32
    %c0_i32_0 = arith.constant 0 : i32
    %c0_i32_1 = arith.constant 0 : i32
    return %c0_i32, %c0_i32_0 : i32, i32
  }
  func.func @transform_17(%arg0: i32) -> (i32, i32) {
    %c0_i32 = arith.constant 0 : i32
    %c0_i32_0 = arith.constant 0 : i32
    %c0_i32_1 = arith.constant 0 : i32
    return %c0_i32, %c0_i32_0 : i32, i32
  }
  func.func @transform_18(%arg0: i32) -> (i32, i32) {
    %c0_i32 = arith.constant 0 : i32
    %c0_i32_0 = arith.constant 0 : i32
    %c0_i32_1 = arith.constant 0 : i32
    return %c0_i32, %c0_i32_0 : i32, i32
  }
}

</mosaic_0001>

<llo_original>
// kernel: attention_decoder_forward.1
$region0: #{attention_decoder_forward.1}
  #allocation0 [shape = 'u32[]', space=smem, size = 0x4, offset = 0x4, fixed_abs, tag = 'smem constant byte address 0x4 - core index']
  #allocation1 [shape = 'u32[72,128]{1,0:T(1,128)}', space=vmem, size = 0x9000, scoped, tag = 'internal scratch']
  #allocation2 [shape = 'f32[16,32]{1,0:T(8,128)}', space=vmem, size = 0x2000, scoped, tag = 'scratch operand']
  #allocation3 [shape = 'f32[1,1]{1,0:T(1,128)S(1)}', space=vmem, size = 0x200, scoped, tag = 'scoped memory for attention_decoder_forward.1']
  %s0 = inlined_call_operand.vmem [shape: f32[8,2,16], index: 0, kind: input, shape index: {}]
  %s1 = inlined_call_operand.vmem [shape: f32[2,8,32], index: 1, kind: input, shape index: {}]
  %s2 = inlined_call_operand.vmem [shape: f32[32,16], index: 2, kind: input, shape index: {}]
  %s3 = inlined_call_operand.vmem [shape: f32[1,16], index: 3, kind: input, shape index: {}]
  %s4 = inlined_call_operand.vmem [shape: f32[32,16], index: 4, kind: input, shape index: {}]
  %s5 = inlined_call_operand.vmem [shape: f32[1,16], index: 5, kind: input, shape index: {}]
  %s6 = inlined_call_operand.vmem [shape: f32[1,16], index: 6, kind: input, shape index: {}]
  %s7 = inlined_call_operand.<no memory space> [shape: f32[1,1], index: 7, kind: input, shape index: {}]
  %s8 = inlined_call_operand.vmem [shape: f32[32,64], index: 8, kind: input, shape index: {}]
  %s9 = inlined_call_operand.vmem [shape: f32[1,64], index: 9, kind: input, shape index: {}]
  %s10 = inlined_call_operand.vmem [shape: f32[16,128], index: 10, kind: input, shape index: {}]
  %s11 = inlined_call_operand.vmem [shape: f32[32,128], index: 11, kind: input, shape index: {}]
  %s12 = inlined_call_operand.vmem [shape: f32[1,128], index: 12, kind: input, shape index: {}]
  %s13 = inlined_call_operand.vmem [shape: f32[32,128], index: 13, kind: input, shape index: {}]
  %s14 = inlined_call_operand.vmem [shape: f32[1,128], index: 14, kind: input, shape index: {}]
  %s15 = inlined_call_operand.vmem [shape: f32[32,64], index: 15, kind: input, shape index: {}]
  %s16 = inlined_call_operand.vmem [shape: f32[1,64], index: 16, kind: input, shape index: {}]
  %s17 = inlined_call_operand.vmem [shape: f32[16,64], index: 17, kind: output, shape index: {0}]
  %s18 = inlined_call_operand.vmem [shape: f32[16,8], index: 18, kind: output, shape index: {1}]
  %19 = xla_tuple %s17, %s18
  %s20 = sld [smem:[#allocation0]]
  $region86: #{attention_decoder_forward.1} parent=0
    _
  %s22 = ssub.s32 1, %s20
  %s23 = scalar_select 0, %s22, %s20
  %v24 = vstv %s7
  %25 = vst [vmem:[#allocation3] sm:$0x1] %v24
  // Predicated region
  $region2: #{attention_decoder_forward.1} parent=0 // pred_check
    _
  $region3: #{attention_decoder_forward.1} parent=0 // pred_check_branch
    %27 = sbr.rel (0) target = $region5
  $region4: #{attention_decoder_forward.1} parent=0 // pred_region
    _
  $region5: #{attention_decoder_forward.1} parent=0 // pred_fallthru
    _
  // Predicated region
  $region6: #{attention_decoder_forward.1} parent=0 // pred_check
    _
  $region7: #{attention_decoder_forward.1} parent=0 // pred_check_branch
    %29 = sbr.rel (0) target = $region9
  $region8: #{attention_decoder_forward.1} parent=0 // pred_region
    _
  $region9: #{attention_decoder_forward.1} parent=0 // pred_fallthru
    _
  // Predicated region
  $region10: #{attention_decoder_forward.1} parent=0 // pred_check
    _
  $region11: #{attention_decoder_forward.1} parent=0 // pred_check_branch
    %31 = sbr.rel (0) target = $region13
  $region12: #{attention_decoder_forward.1} parent=0 // pred_region
    _
  $region13: #{attention_decoder_forward.1} parent=0 // pred_fallthru
    _
  // Predicated region
  $region14: #{attention_decoder_forward.1} parent=0 // pred_check
    _
  $region15: #{attention_decoder_forward.1} parent=0 // pred_check_branch
    %33 = sbr.rel (0) target = $region17
  $region16: #{attention_decoder_forward.1} parent=0 // pred_region
    _
  $region17: #{attention_decoder_forward.1} parent=0 // pred_fallthru
    _
  // Predicated region
  $region18: #{attention_decoder_forward.1} parent=0 // pred_check
    _
  $region19: #{attention_decoder_forward.1} parent=0 // pred_check_branch
    %35 = sbr.rel (0) target = $region21
  $region20: #{attention_decoder_forward.1} parent=0 // pred_region
    _
  $region21: #{attention_decoder_forward.1} parent=0 // pred_fallthru
    _
  // Predicated region
  $region22: #{attention_decoder_forward.1} parent=0 // pred_check
    _
  $region23: #{attention_decoder_forward.1} parent=0 // pred_check_branch
    %37 = sbr.rel (0) target = $region25
  $region24: #{attention_decoder_forward.1} parent=0 // pred_region
    _
  $region25: #{attention_decoder_forward.1} parent=0 // pred_fallthru
    _
  // Predicated region
  $region26: #{attention_decoder_forward.1} parent=0 // pred_check
    _
  $region27: #{attention_decoder_forward.1} parent=0 // pred_check_branch
    %39 = sbr.rel (0) target = $region29
  $region28: #{attention_decoder_forward.1} parent=0 // pred_region
    _
  $region29: #{attention_decoder_forward.1} parent=0 // pred_fallthru
    _
  // Predicated region
  $region30: #{attention_decoder_forward.1} parent=0 // pred_check
    _
  $region31: #{attention_decoder_forward.1} parent=0 // pred_check_branch
    %41 = sbr.rel (0) target = $region33
  $region32: #{attention_decoder_forward.1} parent=0 // pred_region
    _
  $region33: #{attention_decoder_forward.1} parent=0 // pred_fallthru
    _
  // Predicated region
  $region34: #{attention_decoder_forward.1} parent=0 // pred_check
    _
  $region35: #{attention_decoder_forward.1} parent=0 // pred_check_branch
    %43 = sbr.rel (0) target = $region37
  $region36: #{attention_decoder_forward.1} parent=0 // pred_region
    _
  $region37: #{attention_decoder_forward.1} parent=0 // pred_fallthru
    _
  // Predicated region
  $region38: #{attention_decoder_forward.1} parent=0 // pred_check
    _
  $region39: #{attention_decoder_forward.1} parent=0 // pred_check_branch
    %45 = sbr.rel (0) target = $region41
  $region40: #{attention_decoder_forward.1} parent=0 // pred_region
    _
  $region41: #{attention_decoder_forward.1} parent=0 // pred_fallthru
    _
  // Predicated region
  $region42: #{attention_decoder_forward.1} parent=0 // pred_check
    _
  $region43: #{attention_decoder_forward.1} parent=0 // pred_check_branch
    %47 = sbr.rel (0) target = $region45
  $region44: #{attention_decoder_forward.1} parent=0 // pred_region
    _
  $region45: #{attention_decoder_forward.1} parent=0 // pred_fallthru
    _
  // Predicated region
  $region46: #{attention_decoder_forward.1} parent=0 // pred_check
    _
  $region47: #{attention_decoder_forward.1} parent=0 // pred_check_branch
    %49 = sbr.rel (0) target = $region49
  $region48: #{attention_decoder_forward.1} parent=0 // pred_region
    _
  $region49: #{attention_decoder_forward.1} parent=0 // pred_fallthru
    _
  // Predicated region
  $region50: #{attention_decoder_forward.1} parent=0 // pred_check
    _
  $region51: #{attention_decoder_forward.1} parent=0 // pred_check_branch
    %51 = sbr.rel (0) target = $region53
  $region52: #{attention_decoder_forward.1} parent=0 // pred_region
    _
  $region53: #{attention_decoder_forward.1} parent=0 // pred_fallthru
    _
  // Predicated region
  $region54: #{attention_decoder_forward.1} parent=0 // pred_check
    _
  $region55: #{attention_decoder_forward.1} parent=0 // pred_check_branch
    %53 = sbr.rel (0) target = $region57
  $region56: #{attention_decoder_forward.1} parent=0 // pred_region
    _
  $region57: #{attention_decoder_forward.1} parent=0 // pred_fallthru
    _
  // Predicated region
  $region58: #{attention_decoder_forward.1} parent=0 // pred_check
    _
  $region59: #{attention_decoder_forward.1} parent=0 // pred_check_branch
    %55 = sbr.rel (0) target = $region61
  $region60: #{attention_decoder_forward.1} parent=0 // pred_region
    _
  $region61: #{attention_decoder_forward.1} parent=0 // pred_fallthru
    _
  // Predicated region
  $region62: #{attention_decoder_forward.1} parent=0 // pred_check
    _
  $region63: #{attention_decoder_forward.1} parent=0 // pred_check_branch
    %57 = sbr.rel (0) target = $region65
  $region64: #{attention_decoder_forward.1} parent=0 // pred_region
    _
  $region65: #{attention_decoder_forward.1} parent=0 // pred_fallthru
    _
  // Predicated region
  $region66: #{attention_decoder_forward.1} parent=0 // pred_check
    _
  $region67: #{attention_decoder_forward.1} parent=0 // pred_check_branch
    %59 = sbr.rel (0) target = $region69
  $region68: #{attention_decoder_forward.1} parent=0 // pred_region
    _
  $region69: #{attention_decoder_forward.1} parent=0 // pred_fallthru
    _
  %v60 = vld [vmem:[%s1] sm:$0xff]
  %v61 = vld [vmem:[%s1 + $0x8] sm:$0xff]
  %vm62 = vcmask 261120
  %v63 = vsel %vm62, %v60, 0.0
  %v64 = vrot.slane %v63, 4
  %v65 = vadd.f32 %v63, %v64
  %v66 = vrot.slane %v65, 2
  %v67 = vadd.f32 %v65, %v66
  %v68 = vrot.slane %v67, 1
  %v69 = vadd.f32 %v67, %v68
  %v70 = vsel %vm62, %v61, 0.0
  %v71 = vrot.slane %v70, 4
  %v72 = vadd.f32 %v70, %v71
  %v73 = vrot.slane %v72, 2
  %v74 = vadd.f32 %v72, %v73
  %v75 = vrot.slane %v74, 1
  %v76 = vadd.f32 %v74, %v75
  %v77 = vrcp.pop 8.0
  %v78 = vmul.f32 8.0, %v77
  %v79 = vsub.f32 1.0, %v78
  %v80 = vmul.f32 %v77, %v79
  %v81 = vadd.f32 %v77, %v80
  %vm82 = vweird.f32 %v77
  %v83 = vsel %vm82, %v77, %v81
  %v84 = vmul.f32 %v69, %v83
  %v85 = vmul.f32 %v76, %v83
  %v86 = vld [vmem:[%s8] sm:$0xff]
  %v87 = vld [vmem:[%s8 + $0x8] sm:$0xff]
  %v88 = vld [vmem:[%s8 + $0x10] sm:$0xff]
  %v89 = vld [vmem:[%s8 + $0x18] sm:$0xff]
  %v90 = vld [vmem:[%s9] sm:$0x1]
  %v92 = vperm.slane %v90, 0
  %vm96 = vcmask 1041409
  %v97 = vsel %vm96, %v85, %v84
  %v98 = vsel %vm62, %v97, 0
  %100 = vmatpush.msra.mxu0 0.0
  %101 = vmatpush.msra.mxu0 0.0
  %102 = vmatpush.msra.mxu0 0.0
  %103 = vmatpush.msra.mxu0 0.0
  %104 = vmatpush.msra.mxu0 0.0
  %105 = vmatpush.msra.mxu0 0.0
  %106 = vmatpush.msra.mxu0 0.0
  %107 = vmatpush.msra.mxu0 0.0
  %108 = vmatpush.msra.mxu0 0.0
  %109 = vmatpush.msra.mxu0 0.0
  %110 = vmatpush.msra.mxu0 0.0
  %111 = vmatpush.msra.mxu0 0.0
  %112 = vmatpush.msra.mxu0 %v89
  %113 = vmatpush.msra.mxu0 %v88
  %114 = vmatpush.msra.mxu0 %v87
  %115 = vmatpush.msra.mxu0 %v86
  %116 = vmatmul.f32.gmra.mxu0 %v98
  %v117 = vpop.f32.mrf.mxu0
  %v118 = vadd.f32 %v92, %v117
  %119 = vdwg.mxu0
  %v120 = vld [vmem:[%s2] sm:$0xff]
  %v121 = vld [vmem:[%s2 + $0x8] sm:$0xff]
  %v122 = vld [vmem:[%s2 + $0x10] sm:$0xff]
  %v123 = vld [vmem:[%s2 + $0x18] sm:$0xff]
  %v124 = vld [vmem:[%s3] sm:$0x1]
  %v126 = vperm.slane %v124, 0
  %v129 = vsel %vm62, %v60, 0
  %v132 = vsel %vm62, %v61, 0
  %134 = vmatpush.msra.mxu0 0.0
  %135 = vmatpush.msra.mxu0 0.0
  %136 = vmatpush.msra.mxu0 0.0
  %137 = vmatpush.msra.mxu0 0.0
  %138 = vmatpush.msra.mxu0 0.0
  %139 = vmatpush.msra.mxu0 0.0
  %140 = vmatpush.msra.mxu0 0.0
  %141 = vmatpush.msra.mxu0 0.0
  %142 = vmatpush.msra.mxu0 0.0
  %143 = vmatpush.msra.mxu0 0.0
  %144 = vmatpush.msra.mxu0 0.0
  %145 = vmatpush.msra.mxu0 0.0
  %146 = vmatpush.msra.mxu0 %v123
  %147 = vmatpush.msra.mxu0 %v122
  %148 = vmatpush.msra.mxu0 %v121
  %149 = vmatpush.msra.mxu0 %v120
  %150 = vmatmul.f32.gmra.mxu0 %v129
  %v151 = vpop.f32.mrf.mxu0
  %v152 = vadd.f32 %v126, %v151
  %153 = vmatmul.f32.gmra.mxu0 %v132
  %v154 = vpop.f32.mrf.mxu0
  %v155 = vadd.f32 %v126, %v154
  %156 = vdwg.mxu0
  %v157 = vld [vmem:[%s4] sm:$0xff]
  %v158 = vld [vmem:[%s4 + $0x8] sm:$0xff]
  %v159 = vld [vmem:[%s4 + $0x10] sm:$0xff]
  %v160 = vld [vmem:[%s4 + $0x18] sm:$0xff]
  %v161 = vld [vmem:[%s5] sm:$0x1]
  %v162 = vld [vmem:[%s6] sm:$0x1]
  %v163 = vld [vmem:[#allocation3] sm:$0x1]
  %v164 = vld [vmem:[%s10] sm:$0xff]
  %v165 = vld [vmem:[%s10 + $0x8] sm:$0xff]
  %v166 = vld [vmem:[%s11] sm:$0xff]
  %v167 = vld [vmem:[%s11 + $0x8] sm:$0xff]
  %v168 = vld [vmem:[%s11 + $0x10] sm:$0xff]
  %v169 = vld [vmem:[%s11 + $0x18] sm:$0xff]
  %v170 = vld [vmem:[%s12] sm:$0x1]
  %v171 = vld [vmem:[%s13] sm:$0xff]
  %v172 = vld [vmem:[%s13 + $0x8] sm:$0xff]
  %v173 = vld [vmem:[%s13 + $0x10] sm:$0xff]
  %v174 = vld [vmem:[%s13 + $0x18] sm:$0xff]
  %v175 = vld [vmem:[%s14] sm:$0x1]
  %v177 = vperm.slane %v161, 0
  %v180 = vsel %vm62, %v118, 0
  %182 = vmatpush.msra.mxu0 0.0
  %183 = vmatpush.msra.mxu0 0.0
  %184 = vmatpush.msra.mxu0 0.0
  %185 = vmatpush.msra.mxu0 0.0
  %186 = vmatpush.msra.mxu0 0.0
  %187 = vmatpush.msra.mxu0 0.0
  %188 = vmatpush.msra.mxu0 0.0
  %189 = vmatpush.msra.mxu0 0.0
  %190 = vmatpush.msra.mxu0 0.0
  %191 = vmatpush.msra.mxu0 0.0
  %192 = vmatpush.msra.mxu0 0.0
  %193 = vmatpush.msra.mxu0 0.0
  %194 = vmatpush.msra.mxu0 %v160
  %195 = vmatpush.msra.mxu0 %v159
  %196 = vmatpush.msra.mxu0 %v158
  %197 = vmatpush.msra.mxu0 %v157
  %198 = vmatmul.f32.gmra.mxu0 %v180
  %v199 = vpop.f32.mrf.mxu0
  %v200 = vadd.f32 %v177, %v199
  %201 = vdwg.mxu0
  %v203 = vrot.slane %v200, 1
  %v204 = vperm.slane %v200, 0
  %v205 = vperm.slane %v203, 0
  %v208 = vadd.f32 %v152, %v204
  %v209 = vadd.f32 %v155, %v205
  %v210 = vtanh.pop %v208
  %v211 = vtanh.pop %v209
  %v213 = vperm.slane %v162, 0
  %v215 = vmul.f32 %v210, %v213
  %v216 = vmul.f32 %v211, %v213
  %vm217 = vcmask 130048
  %v218 = vsel %vm217, %v215, 0.0
  %219 = vadd.xlane.f32.xlu0 %v218
  %v220 = vpop.xlane.xlu0 %219
  %v221 = vsel %vm217, %v216, 0.0
  %222 = vadd.xlane.f32.xlu0 %v221
  %v223 = vpop.xlane.xlu0 %222
  %v225 = vperm.slane %v163, 0
  %226 = vset.pattern.permute.xlu0 0
  %227 = vperm.xlu0 %226, %v225
  %v228 = vpop.permute.xlu0 %227
  %v230 = vadd.f32 %v220, %v228
  %v231 = vadd.f32 %v223, %v228
  %v234 = vlaneseq
  %v235 = vand.u32 %v234, 127
  %v236 = vperm.slane %v230, %v235
  %v237 = vperm.slane %v231, %v235
  %v238 = vsel %vm96, %v237, %v236
  %vm240 = vcmask 58368
  %v241 = vsel %vm240, %v238, -inf
  %242 = vmax.xlane.f32.xlu0 %v241
  %v243 = vpop.xlane.xlu0 %242
  %v245 = vperm.slane %v243, 0
  %v246 = vperm.slane %v243, 1
  %v249 = vsub.f32 %v230, %v245
  %v250 = vsub.f32 %v231, %v246
  %v251 = vmul.f32 %v249, 1.442695
  %v252 = vpow.pop %v251
  %v253 = vmul.f32 %v250, 1.442695
  %v254 = vpow.pop %v253
  %257 = vset.pattern.permute.xlu0 0
  %258 = vperm.xlu0 %257, %v252
  %v259 = vpop.permute.xlu0 %258
  %260 = vset.pattern.permute.xlu0 0
  %261 = vperm.xlu0 %260, %v254
  %v262 = vpop.permute.xlu0 %261
  %v263 = vperm.slane %v259, %v235
  %v264 = vperm.slane %v262, %v235
  %v265 = vsel %vm96, %v264, %v263
  %v267 = vsel %vm240, %v265, 0.0
  %268 = vadd.xlane.f32.xlu0 %v267
  %v269 = vpop.xlane.xlu0 %268
  %v270 = vrcp.pop %v269
  %v272 = vperm.slane %v270, 0
  %v273 = vperm.slane %v270, 1
  %v276 = vmul.f32 %v252, %v272
  %v277 = vmul.f32 %v254, %v273
  %279 = vset.pattern.permute.xlu0 0
  %280 = vperm.xlu0 %279, %v276
  %v281 = vpop.permute.xlu0 %280
  %284 = vset.pattern.permute.xlu0 0
  %285 = vperm.xlu0 %284, %v277
  %v286 = vpop.permute.xlu0 %285
  %v288 = vmul.f32 %v60, %v281
  %v289 = vmul.f32 %v61, %v286
  %v290 = vsel %vm62, %v288, 0.0
  %v291 = vrot.slane %v290, 4
  %v292 = vadd.f32 %v290, %v291
  %v293 = vrot.slane %v292, 2
  %v294 = vadd.f32 %v292, %v293
  %v295 = vrot.slane %v294, 1
  %v296 = vadd.f32 %v294, %v295
  %v297 = vsel %vm62, %v289, 0.0
  %v298 = vrot.slane %v297, 4
  %v299 = vadd.f32 %v297, %v298
  %v300 = vrot.slane %v299, 2
  %v301 = vadd.f32 %v299, %v300
  %v302 = vrot.slane %v301, 1
  %v303 = vadd.f32 %v301, %v302
  %v304 = vld [vmem:[%s0] sm:$0x3]
  %v307 = vsel %vm96, %v303, %v296
  %v308 = vsel %vm62, %v307, 0
  %310 = vmatpush.msra.mxu0 0.0
  %311 = vmatpush.msra.mxu0 0.0
  %312 = vmatpush.msra.mxu0 0.0
  %313 = vmatpush.msra.mxu0 0.0
  %314 = vmatpush.msra.mxu0 0.0
  %315 = vmatpush.msra.mxu0 0.0
  %316 = vmatpush.msra.mxu0 0.0
  %317 = vmatpush.msra.mxu0 0.0
  %318 = vmatpush.msra.mxu0 0.0
  %319 = vmatpush.msra.mxu0 0.0
  %320 = vmatpush.msra.mxu0 0.0
  %321 = vmatpush.msra.mxu0 0.0
  %322 = vmatpush.msra.mxu0 %v169
  %323 = vmatpush.msra.mxu0 %v168
  %324 = vmatpush.msra.mxu0 %v167
  %325 = vmatpush.msra.mxu0 %v166
  %326 = vmatmul.f32.gmra.mxu0 %v308
  %v327 = vpop.f32.mrf.mxu0
  %v328 = vadd.f32 0.0, %v327
  %329 = vdwg.mxu0
  %v331 = vsel %vm217, %v304, 0
  %333 = vmatpush.msra.mxu0 0.0
  %334 = vmatpush.msra.mxu0 0.0
  %335 = vmatpush.msra.mxu0 0.0
  %336 = vmatpush.msra.mxu0 0.0
  %337 = vmatpush.msra.mxu0 0.0
  %338 = vmatpush.msra.mxu0 0.0
  %339 = vmatpush.msra.mxu0 0.0
  %340 = vmatpush.msra.mxu0 0.0
  %341 = vmatpush.msra.mxu0 0.0
  %342 = vmatpush.msra.mxu0 0.0
  %343 = vmatpush.msra.mxu0 0.0
  %344 = vmatpush.msra.mxu0 0.0
  %345 = vmatpush.msra.mxu0 0.0
  %346 = vmatpush.msra.mxu0 0.0
  %347 = vmatpush.msra.mxu0 %v165
  %348 = vmatpush.msra.mxu0 %v164
  %349 = vmatmul.f32.gmra.mxu0 %v331
  %v350 = vpop.f32.mrf.mxu0
  %v351 = vadd.f32 %v328, %v350
  %352 = vdwg.mxu0
  %v354 = vperm.slane %v170, 0
  %v356 = vadd.f32 %v351, %v354
  %357 = vmatpush.msra.mxu0 0.0
  %358 = vmatpush.msra.mxu0 0.0
  %359 = vmatpush.msra.mxu0 0.0
  %360 = vmatpush.msra.mxu0 0.0
  %361 = vmatpush.msra.mxu0 0.0
  %362 = vmatpush.msra.mxu0 0.0
  %363 = vmatpush.msra.mxu0 0.0
  %364 = vmatpush.msra.mxu0 0.0
  %365 = vmatpush.msra.mxu0 0.0
  %366 = vmatpush.msra.mxu0 0.0
  %367 = vmatpush.msra.mxu0 0.0
  %368 = vmatpush.msra.mxu0 0.0
  %369 = vmatpush.msra.mxu0 %v174
  %370 = vmatpush.msra.mxu0 %v173
  %371 = vmatpush.msra.mxu0 %v172
  %372 = vmatpush.msra.mxu0 %v171
  %373 = vmatmul.f32.gmra.mxu0 %v180
  %v374 = vpop.f32.mrf.mxu0
  %v375 = vadd.f32 0.0, %v374
  %376 = vdwg.mxu0
  %v377 = vadd.f32 %v356, %v375
  %v379 = vperm.slane %v175, 0
  %v381 = vadd.f32 %v377, %v379
  %v382 = vxor.u32 %v381, 2147483648
  %v383 = vmul.f32 %v382, 1.442695
  %v384 = vpow.pop %v383
  %v385 = vadd.f32 %v384, 1.0
  %v386 = vrcp.pop %v385
  %v387 = vmul.f32 %v385, %v386
  %v388 = vsub.f32 1.0, %v387
  %v389 = vmul.f32 %v386, %v388
  %v390 = vadd.f32 %v386, %v389
  %vm391 = vweird.f32 %v385
  %vm392 = vweird.f32 %v386
  %vm393 = vmor %vm391, %vm392
  %v394 = vsel %vm393, %v386, %v390
  %v395 = vand.u32 2147483647, %v385
  %vm396 = vcmp.eq.f32.partialorder %v395, 8.507059e+37
  %v397 = vand.u32 %v385, 2147483648
  %v398 = vor.u32 1.1754944e-38, %v397
  %v399 = vsel %vm396, %v398, %v394
  %v400 = vmul.f32 1.0, %v399
  %v401 = vtanh.pop %v381
  %v402 = vmul.f32 %v400, %v118
  %404 = vrot.lane.b32.xlu0 %v401, 64
  %v405 = vpop.permute.xlu0 %404
  %v407 = vmul.f32 %v400, %v405
  %409 = vrot.lane.b32.xlu0 %v407, 32
  %v410 = vpop.permute.xlu0 %409
  %v412 = vadd.f32 %v402, %v410
  %v413 = vtanh.pop %v412
  %415 = vrot.lane.b32.xlu0 %v413, 64
  %v416 = vpop.permute.xlu0 %415
  %v418 = vmul.f32 %v400, %v416
  %420 = vrot.lane.b32.xlu0 %v418, 32
  %v421 = vpop.permute.xlu0 %420
  %vm423 = vcmask 254976
  %424 = vst.msk [vmem:[#allocation2] sm:$0x3] %vm423, %v421
  %v425 = vperm.slane %v281, %v235
  %v426 = vperm.slane %v286, %v235
  %v427 = vsel %vm96, %v426, %v425
  %429 = vst.msk [vmem:[%s18] sm:$0x3] %vm240, %v427
  %v430 = vsel %vm62, %v421, 0
  %432 = vmatpush.msra.mxu0 0.0
  %433 = vmatpush.msra.mxu0 0.0
  %434 = vmatpush.msra.mxu0 0.0
  %435 = vmatpush.msra.mxu0 0.0
  %436 = vmatpush.msra.mxu0 0.0
  %437 = vmatpush.msra.mxu0 0.0
  %438 = vmatpush.msra.mxu0 0.0
  %439 = vmatpush.msra.mxu0 0.0
  %440 = vmatpush.msra.mxu0 0.0
  %441 = vmatpush.msra.mxu0 0.0
  %442 = vmatpush.msra.mxu0 0.0
  %443 = vmatpush.msra.mxu0 0.0
  %444 = vmatpush.msra.mxu0 %v160
  %445 = vmatpush.msra.mxu0 %v159
  %446 = vmatpush.msra.mxu0 %v158
  %447 = vmatpush.msra.mxu0 %v157
  %448 = vmatmul.f32.gmra.mxu0 %v430
  %v449 = vpop.f32.mrf.mxu0
  %v450 = vadd.f32 %v177, %v449
  %451 = vdwg.mxu0
  %v453 = vrot.slane %v450, 1
  %v454 = vperm.slane %v450, 0
  %v455 = vperm.slane %v453, 0
  %v458 = vadd.f32 %v152, %v454
  %v459 = vadd.f32 %v155, %v455
  %v460 = vtanh.pop %v458
  %v461 = vtanh.pop %v459
  %v462 = vmul.f32 %v460, %v213
  %v463 = vmul.f32 %v461, %v213
  %v464 = vsel %vm217, %v462, 0.0
  %465 = vadd.xlane.f32.xlu0 %v464
  %v466 = vpop.xlane.xlu0 %465
  %v467 = vsel %vm217, %v463, 0.0
  %468 = vadd.xlane.f32.xlu0 %v467
  %v469 = vpop.xlane.xlu0 %468
  %v470 = vadd.f32 %v466, %v228
  %v471 = vadd.f32 %v469, %v228
  %v474 = vperm.slane %v470, %v235
  %v475 = vperm.slane %v471, %v235
  %v476 = vsel %vm96, %v475, %v474
  %v478 = vsel %vm240, %v476, -inf
  %479 = vmax.xlane.f32.xlu0 %v478
  %v480 = vpop.xlane.xlu0 %479
  %v482 = vperm.slane %v480, 0
  %v483 = vperm.slane %v480, 1
  %v486 = vsub.f32 %v470, %v482
  %v487 = vsub.f32 %v471, %v483
  %v488 = vmul.f32 %v486, 1.442695
  %v489 = vpow.pop %v488
  %v490 = vmul.f32 %v487, 1.442695
  %v491 = vpow.pop %v490
  %494 = vset.pattern.permute.xlu0 0
  %495 = vperm.xlu0 %494, %v489
  %v496 = vpop.permute.xlu0 %495
  %497 = vset.pattern.permute.xlu0 0
  %498 = vperm.xlu0 %497, %v491
  %v499 = vpop.permute.xlu0 %498
  %v500 = vperm.slane %v496, %v235
  %v501 = vperm.slane %v499, %v235
  %v502 = vsel %vm96, %v501, %v500
  %v504 = vsel %vm240, %v502, 0.0
  %505 = vadd.xlane.f32.xlu0 %v504
  %v506 = vpop.xlane.xlu0 %505
  %v507 = vrcp.pop %v506
  %v509 = vperm.slane %v507, 0
  %v510 = vperm.slane %v507, 1
  %v513 = vmul.f32 %v489, %v509
  %v514 = vmul.f32 %v491, %v510
  %516 = vset.pattern.permute.xlu0 0
  %517 = vperm.xlu0 %516, %v513
  %v518 = vpop.permute.xlu0 %517
  %521 = vset.pattern.permute.xlu0 0
  %522 = vperm.xlu0 %521, %v514
  %v523 = vpop.permute.xlu0 %522
  %v525 = vmul.f32 %v60, %v518
  %v526 = vmul.f32 %v61, %v523
  %v527 = vsel %vm62, %v525, 0.0
  %v528 = vrot.slane %v527, 4
  %v529 = vadd.f32 %v527, %v528
  %v530 = vrot.slane %v529, 2
  %v531 = vadd.f32 %v529, %v530
  %v532 = vrot.slane %v531, 1
  %v533 = vadd.f32 %v531, %v532
  %v534 = vsel %vm62, %v526, 0.0
  %v535 = vrot.slane %v534, 4
  %v536 = vadd.f32 %v534, %v535
  %v537 = vrot.slane %v536, 2
  %v538 = vadd.f32 %v536, %v537
  %v539 = vrot.slane %v538, 1
  %v540 = vadd.f32 %v538, %v539
  %s541 = scalar_lea.vmem %s0, 2
  %v542 = vld [vmem:[%s541] sm:$0x3]
  %v545 = vsel %vm96, %v540, %v533
  %v546 = vsel %vm62, %v545, 0
  %548 = vmatpush.msra.mxu0 0.0
  %549 = vmatpush.msra.mxu0 0.0
  %550 = vmatpush.msra.mxu0 0.0
  %551 = vmatpush.msra.mxu0 0.0
  %552 = vmatpush.msra.mxu0 0.0
  %553 = vmatpush.msra.mxu0 0.0
  %554 = vmatpush.msra.mxu0 0.0
  %555 = vmatpush.msra.mxu0 0.0
  %556 = vmatpush.msra.mxu0 0.0
  %557 = vmatpush.msra.mxu0 0.0
  %558 = vmatpush.msra.mxu0 0.0
  %559 = vmatpush.msra.mxu0 0.0
  %560 = vmatpush.msra.mxu0 %v169
  %561 = vmatpush.msra.mxu0 %v168
  %562 = vmatpush.msra.mxu0 %v167
  %563 = vmatpush.msra.mxu0 %v166
  %564 = vmatmul.f32.gmra.mxu0 %v546
  %v565 = vpop.f32.mrf.mxu0
  %v566 = vadd.f32 0.0, %v565
  %567 = vdwg.mxu0
  %v569 = vsel %vm217, %v542, 0
  %571 = vmatpush.msra.mxu0 0.0
  %572 = vmatpush.msra.mxu0 0.0
  %573 = vmatpush.msra.mxu0 0.0
  %574 = vmatpush.msra.mxu0 0.0
  %575 = vmatpush.msra.mxu0 0.0
  %576 = vmatpush.msra.mxu0 0.0
  %577 = vmatpush.msra.mxu0 0.0
  %578 = vmatpush.msra.mxu0 0.0
  %579 = vmatpush.msra.mxu0 0.0
  %580 = vmatpush.msra.mxu0 0.0
  %581 = vmatpush.msra.mxu0 0.0
  %582 = vmatpush.msra.mxu0 0.0
  %583 = vmatpush.msra.mxu0 0.0
  %584 = vmatpush.msra.mxu0 0.0
  %585 = vmatpush.msra.mxu0 %v165
  %586 = vmatpush.msra.mxu0 %v164
  %587 = vmatmul.f32.gmra.mxu0 %v569
  %v588 = vpop.f32.mrf.mxu0
  %v589 = vadd.f32 %v566, %v588
  %590 = vdwg.mxu0
  %v591 = vadd.f32 %v589, %v354
  %592 = vmatpush.msra.mxu0 0.0
  %593 = vmatpush.msra.mxu0 0.0
  %594 = vmatpush.msra.mxu0 0.0
  %595 = vmatpush.msra.mxu0 0.0
  %596 = vmatpush.msra.mxu0 0.0
  %597 = vmatpush.msra.mxu0 0.0
  %598 = vmatpush.msra.mxu0 0.0
  %599 = vmatpush.msra.mxu0 0.0
  %600 = vmatpush.msra.mxu0 0.0
  %601 = vmatpush.msra.mxu0 0.0
  %602 = vmatpush.msra.mxu0 0.0
  %603 = vmatpush.msra.mxu0 0.0
  %604 = vmatpush.msra.mxu0 %v174
  %605 = vmatpush.msra.mxu0 %v173
  %606 = vmatpush.msra.mxu0 %v172
  %607 = vmatpush.msra.mxu0 %v171
  %608 = vmatmul.f32.gmra.mxu0 %v430
  %v609 = vpop.f32.mrf.mxu0
  %v610 = vadd.f32 0.0, %v609
  %611 = vdwg.mxu0
  %v612 = vadd.f32 %v591, %v610
  %v613 = vadd.f32 %v612, %v379
  %v614 = vxor.u32 %v613, 2147483648
  %v615 = vmul.f32 %v614, 1.442695
  %v616 = vpow.pop %v615
  %v617 = vadd.f32 %v616, 1.0
  %v618 = vrcp.pop %v617
  %v619 = vmul.f32 %v617, %v618
  %v620 = vsub.f32 1.0, %v619
  %v621 = vmul.f32 %v618, %v620
  %v622 = vadd.f32 %v618, %v621
  %vm623 = vweird.f32 %v617
  %vm624 = vweird.f32 %v618
  %vm625 = vmor %vm623, %vm624
  %v626 = vsel %vm625, %v618, %v622
  %v627 = vand.u32 2147483647, %v617
  %vm628 = vcmp.eq.f32.partialorder %v627, 8.507059e+37
  %v629 = vand.u32 %v617, 2147483648
  %v630 = vor.u32 1.1754944e-38, %v629
  %v631 = vsel %vm628, %v630, %v626
  %v632 = vmul.f32 1.0, %v631
  %v633 = vtanh.pop %v613
  %v634 = vmul.f32 %v632, %v412
  %636 = vrot.lane.b32.xlu0 %v633, 64
  %v637 = vpop.permute.xlu0 %636
  %v639 = vmul.f32 %v632, %v637
  %641 = vrot.lane.b32.xlu0 %v639, 32
  %v642 = vpop.permute.xlu0 %641
  %v644 = vadd.f32 %v634, %v642
  %v645 = vtanh.pop %v644
  %647 = vrot.lane.b32.xlu0 %v645, 64
  %v648 = vpop.permute.xlu0 %647
  %v650 = vmul.f32 %v632, %v648
  %652 = vrot.lane.b32.xlu0 %v650, 32
  %v653 = vpop.permute.xlu0 %652
  %655 = vst.msk [vmem:[#allocation2 + $0x2] sm:$0x3] %vm423, %v653
  %v656 = vperm.slane %v518, %v235
  %v657 = vperm.slane %v523, %v235
  %v658 = vsel %vm96, %v657, %v656
  %660 = vst.msk [vmem:[%s18 + $0x2] sm:$0x3] %vm240, %v658
  %v661 = vsel %vm62, %v653, 0
  %663 = vmatpush.msra.mxu0 0.0
  %664 = vmatpush.msra.mxu0 0.0
  %665 = vmatpush.msra.mxu0 0.0
  %666 = vmatpush.msra.mxu0 0.0
  %667 = vmatpush.msra.mxu0 0.0
  %668 = vmatpush.msra.mxu0 0.0
  %669 = vmatpush.msra.mxu0 0.0
  %670 = vmatpush.msra.mxu0 0.0
  %671 = vmatpush.msra.mxu0 0.0
  %672 = vmatpush.msra.mxu0 0.0
  %673 = vmatpush.msra.mxu0 0.0
  %674 = vmatpush.msra.mxu0 0.0
  %675 = vmatpush.msra.mxu0 %v160
  %676 = vmatpush.msra.mxu0 %v159
  %677 = vmatpush.msra.mxu0 %v158
  %678 = vmatpush.msra.mxu0 %v157
  %679 = vmatmul.f32.gmra.mxu0 %v661
  %v680 = vpop.f32.mrf.mxu0
  %v681 = vadd.f32 %v177, %v680
  %682 = vdwg.mxu0
  %v684 = vrot.slane %v681, 1
  %v685 = vperm.slane %v681, 0
  %v686 = vperm.slane %v684, 0
  %v689 = vadd.f32 %v152, %v685
  %v690 = vadd.f32 %v155, %v686
  %v691 = vtanh.pop %v689
  %v692 = vtanh.pop %v690
  %v693 = vmul.f32 %v691, %v213
  %v694 = vmul.f32 %v692, %v213
  %v695 = vsel %vm217, %v693, 0.0
  %696 = vadd.xlane.f32.xlu0 %v695
  %v697 = vpop.xlane.xlu0 %696
  %v698 = vsel %vm217, %v694, 0.0
  %699 = vadd.xlane.f32.xlu0 %v698
  %v700 = vpop.xlane.xlu0 %699
  %v701 = vadd.f32 %v697, %v228
  %v702 = vadd.f32 %v700, %v228
  %v705 = vperm.slane %v701, %v235
  %v706 = vperm.slane %v702, %v235
  %v707 = vsel %vm96, %v706, %v705
  %v709 = vsel %vm240, %v707, -inf
  %710 = vmax.xlane.f32.xlu0 %v709
  %v711 = vpop.xlane.xlu0 %710
  %v713 = vperm.slane %v711, 0
  %v714 = vperm.slane %v711, 1
  %v717 = vsub.f32 %v701, %v713
  %v718 = vsub.f32 %v702, %v714
  %v719 = vmul.f32 %v717, 1.442695
  %v720 = vpow.pop %v719
  %v721 = vmul.f32 %v718, 1.442695
  %v722 = vpow.pop %v721
  %725 = vset.pattern.permute.xlu0 0
  %726 = vperm.xlu0 %725, %v720
  %v727 = vpop.permute.xlu0 %726
  %728 = vset.pattern.permute.xlu0 0
  %729 = vperm.xlu0 %728, %v722
  %v730 = vpop.permute.xlu0 %729
  %v731 = vperm.slane %v727, %v235
  %v732 = vperm.slane %v730, %v235
  %v733 = vsel %vm96, %v732, %v731
  %v735 = vsel %vm240, %v733, 0.0
  %736 = vadd.xlane.f32.xlu0 %v735
  %v737 = vpop.xlane.xlu0 %736
  %v738 = vrcp.pop %v737
  %v740 = vperm.slane %v738, 0
  %v741 = vperm.slane %v738, 1
  %v744 = vmul.f32 %v720, %v740
  %v745 = vmul.f32 %v722, %v741
  %747 = vset.pattern.permute.xlu0 0
  %748 = vperm.xlu0 %747, %v744
  %v749 = vpop.permute.xlu0 %748
  %752 = vset.pattern.permute.xlu0 0
  %753 = vperm.xlu0 %752, %v745
  %v754 = vpop.permute.xlu0 %753
  %v756 = vmul.f32 %v60, %v749
  %v757 = vmul.f32 %v61, %v754
  %v758 = vsel %vm62, %v756, 0.0
  %v759 = vrot.slane %v758, 4
  %v760 = vadd.f32 %v758, %v759
  %v761 = vrot.slane %v760, 2
  %v762 = vadd.f32 %v760, %v761
  %v763 = vrot.slane %v762, 1
  %v764 = vadd.f32 %v762, %v763
  %v765 = vsel %vm62, %v757, 0.0
  %v766 = vrot.slane %v765, 4
  %v767 = vadd.f32 %v765, %v766
  %v768 = vrot.slane %v767, 2
  %v769 = vadd.f32 %v767, %v768
  %v770 = vrot.slane %v769, 1
  %v771 = vadd.f32 %v769, %v770
  %s772 = scalar_lea.vmem %s0, 4
  %v773 = vld [vmem:[%s772] sm:$0x3]
  %v776 = vsel %vm96, %v771, %v764
  %v777 = vsel %vm62, %v776, 0
  %779 = vmatpush.msra.mxu0 0.0
  %780 = vmatpush.msra.mxu0 0.0
  %781 = vmatpush.msra.mxu0 0.0
  %782 = vmatpush.msra.mxu0 0.0
  %783 = vmatpush.msra.mxu0 0.0
  %784 = vmatpush.msra.mxu0 0.0
  %785 = vmatpush.msra.mxu0 0.0
  %786 = vmatpush.msra.mxu0 0.0
  %787 = vmatpush.msra.mxu0 0.0
  %788 = vmatpush.msra.mxu0 0.0
  %789 = vmatpush.msra.mxu0 0.0
  %790 = vmatpush.msra.mxu0 0.0
  %791 = vmatpush.msra.mxu0 %v169
  %792 = vmatpush.msra.mxu0 %v168
  %793 = vmatpush.msra.mxu0 %v167
  %794 = vmatpush.msra.mxu0 %v166
  %795 = vmatmul.f32.gmra.mxu0 %v777
  %v796 = vpop.f32.mrf.mxu0
  %v797 = vadd.f32 0.0, %v796
  %798 = vdwg.mxu0
  %v800 = vsel %vm217, %v773, 0
  %802 = vmatpush.msra.mxu0 0.0
  %803 = vmatpush.msra.mxu0 0.0
  %804 = vmatpush.msra.mxu0 0.0
  %805 = vmatpush.msra.mxu0 0.0
  %806 = vmatpush.msra.mxu0 0.0
  %807 = vmatpush.msra.mxu0 0.0
  %808 = vmatpush.msra.mxu0 0.0
  %809 = vmatpush.msra.mxu0 0.0
  %810 = vmatpush.msra.mxu0 0.0
  %811 = vmatpush.msra.mxu0 0.0
  %812 = vmatpush.msra.mxu0 0.0
  %813 = vmatpush.msra.mxu0 0.0
  %814 = vmatpush.msra.mxu0 0.0
  %815 = vmatpush.msra.mxu0 0.0
  %816 = vmatpush.msra.mxu0 %v165
  %817 = vmatpush.msra.mxu0 %v164
  %818 = vmatmul.f32.gmra.mxu0 %v800
  %v819 = vpop.f32.mrf.mxu0
  %v820 = vadd.f32 %v797, %v819
  %821 = vdwg.mxu0
  %v822 = vadd.f32 %v820, %v354
  %823 = vmatpush.msra.mxu0 0.0
  %824 = vmatpush.msra.mxu0 0.0
  %825 = vmatpush.msra.mxu0 0.0
  %826 = vmatpush.msra.mxu0 0.0
  %827 = vmatpush.msra.mxu0 0.0
  %828 = vmatpush.msra.mxu0 0.0
  %829 = vmatpush.msra.mxu0 0.0
  %830 = vmatpush.msra.mxu0 0.0
  %831 = vmatpush.msra.mxu0 0.0
  %832 = vmatpush.msra.mxu0 0.0
  %833 = vmatpush.msra.mxu0 0.0
  %834 = vmatpush.msra.mxu0 0.0
  %835 = vmatpush.msra.mxu0 %v174
  %836 = vmatpush.msra.mxu0 %v173
  %837 = vmatpush.msra.mxu0 %v172
  %838 = vmatpush.msra.mxu0 %v171
  %839 = vmatmul.f32.gmra.mxu0 %v661
  %v840 = vpop.f32.mrf.mxu0
  %v841 = vadd.f32 0.0, %v840
  %842 = vdwg.mxu0
  %v843 = vadd.f32 %v822, %v841
  %v844 = vadd.f32 %v843, %v379
  %v845 = vxor.u32 %v844, 2147483648
  %v846 = vmul.f32 %v845, 1.442695
  %v847 = vpow.pop %v846
  %v848 = vadd.f32 %v847, 1.0
  %v849 = vrcp.pop %v848
  %v850 = vmul.f32 %v848, %v849
  %v851 = vsub.f32 1.0, %v850
  %v852 = vmul.f32 %v849, %v851
  %v853 = vadd.f32 %v849, %v852
  %vm854 = vweird.f32 %v848
  %vm855 = vweird.f32 %v849
  %vm856 = vmor %vm854, %vm855
  %v857 = vsel %vm856, %v849, %v853
  %v858 = vand.u32 2147483647, %v848
  %vm859 = vcmp.eq.f32.partialorder %v858, 8.507059e+37
  %v860 = vand.u32 %v848, 2147483648
  %v861 = vor.u32 1.1754944e-38, %v860
  %v862 = vsel %vm859, %v861, %v857
  %v863 = vmul.f32 1.0, %v862
  %v864 = vtanh.pop %v844
  %v865 = vmul.f32 %v863, %v644
  %867 = vrot.lane.b32.xlu0 %v864, 64
  %v868 = vpop.permute.xlu0 %867
  %v870 = vmul.f32 %v863, %v868
  %872 = vrot.lane.b32.xlu0 %v870, 32
  %v873 = vpop.permute.xlu0 %872
  %v875 = vadd.f32 %v865, %v873
  %v876 = vtanh.pop %v875
  %878 = vrot.lane.b32.xlu0 %v876, 64
  %v879 = vpop.permute.xlu0 %878
  %v881 = vmul.f32 %v863, %v879
  %883 = vrot.lane.b32.xlu0 %v881, 32
  %v884 = vpop.permute.xlu0 %883
  %886 = vst.msk [vmem:[#allocation2 + $0x4] sm:$0x3] %vm423, %v884
  %v887 = vperm.slane %v749, %v235
  %v888 = vperm.slane %v754, %v235
  %v889 = vsel %vm96, %v888, %v887
  %891 = vst.msk [vmem:[%s18 + $0x4] sm:$0x3] %vm240, %v889
  %v892 = vsel %vm62, %v884, 0
  %894 = vmatpush.msra.mxu0 0.0
  %895 = vmatpush.msra.mxu0 0.0
  %896 = vmatpush.msra.mxu0 0.0
  %897 = vmatpush.msra.mxu0 0.0
  %898 = vmatpush.msra.mxu0 0.0
  %899 = vmatpush.msra.mxu0 0.0
  %900 = vmatpush.msra.mxu0 0.0
  %901 = vmatpush.msra.mxu0 0.0
  %902 = vmatpush.msra.mxu0 0.0
  %903 = vmatpush.msra.mxu0 0.0
  %904 = vmatpush.msra.mxu0 0.0
  %905 = vmatpush.msra.mxu0 0.0
  %906 = vmatpush.msra.mxu0 %v160
  %907 = vmatpush.msra.mxu0 %v159
  %908 = vmatpush.msra.mxu0 %v158
  %909 = vmatpush.msra.mxu0 %v157
  %910 = vmatmul.f32.gmra.mxu0 %v892
  %v911 = vpop.f32.mrf.mxu0
  %v912 = vadd.f32 %v177, %v911
  %913 = vdwg.mxu0
  %v915 = vrot.slane %v912, 1
  %v916 = vperm.slane %v912, 0
  %v917 = vperm.slane %v915, 0
  %v920 = vadd.f32 %v152, %v916
  %v921 = vadd.f32 %v155, %v917
  %v922 = vtanh.pop %v920
  %v923 = vtanh.pop %v921
  %v924 = vmul.f32 %v922, %v213
  %v925 = vmul.f32 %v923, %v213
  %v926 = vsel %vm217, %v924, 0.0
  %927 = vadd.xlane.f32.xlu0 %v926
  %v928 = vpop.xlane.xlu0 %927
  %v929 = vsel %vm217, %v925, 0.0
  %930 = vadd.xlane.f32.xlu0 %v929
  %v931 = vpop.xlane.xlu0 %930
  %v932 = vadd.f32 %v928, %v228
  %v933 = vadd.f32 %v931, %v228
  %v936 = vperm.slane %v932, %v235
  %v937 = vperm.slane %v933, %v235
  %v938 = vsel %vm96, %v937, %v936
  %v940 = vsel %vm240, %v938, -inf
  %941 = vmax.xlane.f32.xlu0 %v940
  %v942 = vpop.xlane.xlu0 %941
  %v944 = vperm.slane %v942, 0
  %v945 = vperm.slane %v942, 1
  %v948 = vsub.f32 %v932, %v944
  %v949 = vsub.f32 %v933, %v945
  %v950 = vmul.f32 %v948, 1.442695
  %v951 = vpow.pop %v950
  %v952 = vmul.f32 %v949, 1.442695
  %v953 = vpow.pop %v952
  %956 = vset.pattern.permute.xlu0 0
  %957 = vperm.xlu0 %956, %v951
  %v958 = vpop.permute.xlu0 %957
  %959 = vset.pattern.permute.xlu0 0
  %960 = vperm.xlu0 %959, %v953
  %v961 = vpop.permute.xlu0 %960
  %v962 = vperm.slane %v958, %v235
  %v963 = vperm.slane %v961, %v235
  %v964 = vsel %vm96, %v963, %v962
  %v966 = vsel %vm240, %v964, 0.0
  %967 = vadd.xlane.f32.xlu0 %v966
  %v968 = vpop.xlane.xlu0 %967
  %v969 = vrcp.pop %v968
  %v971 = vperm.slane %v969, 0
  %v972 = vperm.slane %v969, 1
  %v975 = vmul.f32 %v951, %v971
  %v976 = vmul.f32 %v953, %v972
  %978 = vset.pattern.permute.xlu0 0
  %979 = vperm.xlu0 %978, %v975
  %v980 = vpop.permute.xlu0 %979
  %983 = vset.pattern.permute.xlu0 0
  %984 = vperm.xlu0 %983, %v976
  %v985 = vpop.permute.xlu0 %984
  %v987 = vmul.f32 %v60, %v980
  %v988 = vmul.f32 %v61, %v985
  %v989 = vsel %vm62, %v987, 0.0
  %v990 = vrot.slane %v989, 4
  %v991 = vadd.f32 %v989, %v990
  %v992 = vrot.slane %v991, 2
  %v993 = vadd.f32 %v991, %v992
  %v994 = vrot.slane %v993, 1
  %v995 = vadd.f32 %v993, %v994
  %v996 = vsel %vm62, %v988, 0.0
  %v997 = vrot.slane %v996, 4
  %v998 = vadd.f32 %v996, %v997
  %v999 = vrot.slane %v998, 2
  %v1000 = vadd.f32 %v998, %v999
  %v1001 = vrot.slane %v1000, 1
  %v1002 = vadd.f32 %v1000, %v1001
  %s1003 = scalar_lea.vmem %s0, 6
  %v1004 = vld [vmem:[%s1003] sm:$0x3]
  %v1007 = vsel %vm96, %v1002, %v995
  %v1008 = vsel %vm62, %v1007, 0
  %1010 = vmatpush.msra.mxu0 0.0
  %1011 = vmatpush.msra.mxu0 0.0
  %1012 = vmatpush.msra.mxu0 0.0
  %1013 = vmatpush.msra.mxu0 0.0
  %1014 = vmatpush.msra.mxu0 0.0
  %1015 = vmatpush.msra.mxu0 0.0
  %1016 = vmatpush.msra.mxu0 0.0
  %1017 = vmatpush.msra.mxu0 0.0
  %1018 = vmatpush.msra.mxu0 0.0
  %1019 = vmatpush.msra.mxu0 0.0
  %1020 = vmatpush.msra.mxu0 0.0
  %1021 = vmatpush.msra.mxu0 0.0
  %1022 = vmatpush.msra.mxu0 %v169
  %1023 = vmatpush.msra.mxu0 %v168
  %1024 = vmatpush.msra.mxu0 %v167
  %1025 = vmatpush.msra.mxu0 %v166
  %1026 = vmatmul.f32.gmra.mxu0 %v1008
  %v1027 = vpop.f32.mrf.mxu0
  %v1028 = vadd.f32 0.0, %v1027
  %1029 = vdwg.mxu0
  %v1031 = vsel %vm217, %v1004, 0
  %1033 = vmatpush.msra.mxu0 0.0
  %1034 = vmatpush.msra.mxu0 0.0
  %1035 = vmatpush.msra.mxu0 0.0
  %1036 = vmatpush.msra.mxu0 0.0
  %1037 = vmatpush.msra.mxu0 0.0
  %1038 = vmatpush.msra.mxu0 0.0
  %1039 = vmatpush.msra.mxu0 0.0
  %1040 = vmatpush.msra.mxu0 0.0
  %1041 = vmatpush.msra.mxu0 0.0
  %1042 = vmatpush.msra.mxu0 0.0
  %1043 = vmatpush.msra.mxu0 0.0
  %1044 = vmatpush.msra.mxu0 0.0
  %1045 = vmatpush.msra.mxu0 0.0
  %1046 = vmatpush.msra.mxu0 0.0
  %1047 = vmatpush.msra.mxu0 %v165
  %1048 = vmatpush.msra.mxu0 %v164
  %1049 = vmatmul.f32.gmra.mxu0 %v1031
  %v1050 = vpop.f32.mrf.mxu0
  %v1051 = vadd.f32 %v1028, %v1050
  %1052 = vdwg.mxu0
  %v1053 = vadd.f32 %v1051, %v354
  %1054 = vmatpush.msra.mxu0 0.0
  %1055 = vmatpush.msra.mxu0 0.0
  %1056 = vmatpush.msra.mxu0 0.0
  %1057 = vmatpush.msra.mxu0 0.0
  %1058 = vmatpush.msra.mxu0 0.0
  %1059 = vmatpush.msra.mxu0 0.0
  %1060 = vmatpush.msra.mxu0 0.0
  %1061 = vmatpush.msra.mxu0 0.0
  %1062 = vmatpush.msra.mxu0 0.0
  %1063 = vmatpush.msra.mxu0 0.0
  %1064 = vmatpush.msra.mxu0 0.0
  %1065 = vmatpush.msra.mxu0 0.0
  %1066 = vmatpush.msra.mxu0 %v174
  %1067 = vmatpush.msra.mxu0 %v173
  %1068 = vmatpush.msra.mxu0 %v172
  %1069 = vmatpush.msra.mxu0 %v171
  %1070 = vmatmul.f32.gmra.mxu0 %v892
  %v1071 = vpop.f32.mrf.mxu0
  %v1072 = vadd.f32 0.0, %v1071
  %1073 = vdwg.mxu0
  %v1074 = vadd.f32 %v1053, %v1072
  %v1075 = vadd.f32 %v1074, %v379
  %v1076 = vxor.u32 %v1075, 2147483648
  %v1077 = vmul.f32 %v1076, 1.442695
  %v1078 = vpow.pop %v1077
  %v1079 = vadd.f32 %v1078, 1.0
  %v1080 = vrcp.pop %v1079
  %v1081 = vmul.f32 %v1079, %v1080
  %v1082 = vsub.f32 1.0, %v1081
  %v1083 = vmul.f32 %v1080, %v1082
  %v1084 = vadd.f32 %v1080, %v1083
  %vm1085 = vweird.f32 %v1079
  %vm1086 = vweird.f32 %v1080
  %vm1087 = vmor %vm1085, %vm1086
  %v1088 = vsel %vm1087, %v1080, %v1084
  %v1089 = vand.u32 2147483647, %v1079
  %vm1090 = vcmp.eq.f32.partialorder %v1089, 8.507059e+37
  %v1091 = vand.u32 %v1079, 2147483648
  %v1092 = vor.u32 1.1754944e-38, %v1091
  %v1093 = vsel %vm1090, %v1092, %v1088
  %v1094 = vmul.f32 1.0, %v1093
  %v1095 = vtanh.pop %v1075
  %v1096 = vmul.f32 %v1094, %v875
  %1098 = vrot.lane.b32.xlu0 %v1095, 64
  %v1099 = vpop.permute.xlu0 %1098
  %v1101 = vmul.f32 %v1094, %v1099
  %1103 = vrot.lane.b32.xlu0 %v1101, 32
  %v1104 = vpop.permute.xlu0 %1103
  %v1106 = vadd.f32 %v1096, %v1104
  %v1107 = vtanh.pop %v1106
  %1109 = vrot.lane.b32.xlu0 %v1107, 64
  %v1110 = vpop.permute.xlu0 %1109
  %v1112 = vmul.f32 %v1094, %v1110
  %1114 = vrot.lane.b32.xlu0 %v1112, 32
  %v1115 = vpop.permute.xlu0 %1114
  %1117 = vst.msk [vmem:[#allocation2 + $0x6] sm:$0x3] %vm423, %v1115
  %v1118 = vperm.slane %v980, %v235
  %v1119 = vperm.slane %v985, %v235
  %v1120 = vsel %vm96, %v1119, %v1118
  %1122 = vst.msk [vmem:[%s18 + $0x6] sm:$0x3] %vm240, %v1120
  %v1123 = vsel %vm62, %v1115, 0
  %1125 = vmatpush.msra.mxu0 0.0
  %1126 = vmatpush.msra.mxu0 0.0
  %1127 = vmatpush.msra.mxu0 0.0
  %1128 = vmatpush.msra.mxu0 0.0
  %1129 = vmatpush.msra.mxu0 0.0
  %1130 = vmatpush.msra.mxu0 0.0
  %1131 = vmatpush.msra.mxu0 0.0
  %1132 = vmatpush.msra.mxu0 0.0
  %1133 = vmatpush.msra.mxu0 0.0
  %1134 = vmatpush.msra.mxu0 0.0
  %1135 = vmatpush.msra.mxu0 0.0
  %1136 = vmatpush.msra.mxu0 0.0
  %1137 = vmatpush.msra.mxu0 %v160
  %1138 = vmatpush.msra.mxu0 %v159
  %1139 = vmatpush.msra.mxu0 %v158
  %1140 = vmatpush.msra.mxu0 %v157
  %1141 = vmatmul.f32.gmra.mxu0 %v1123
  %v1142 = vpop.f32.mrf.mxu0
  %v1143 = vadd.f32 %v177, %v1142
  %1144 = vdwg.mxu0
  %v1146 = vrot.slane %v1143, 1
  %v1147 = vperm.slane %v1143, 0
  %v1148 = vperm.slane %v1146, 0
  %v1151 = vadd.f32 %v152, %v1147
  %v1152 = vadd.f32 %v155, %v1148
  %v1153 = vtanh.pop %v1151
  %v1154 = vtanh.pop %v1152
  %v1155 = vmul.f32 %v1153, %v213
  %v1156 = vmul.f32 %v1154, %v213
  %v1157 = vsel %vm217, %v1155, 0.0
  %1158 = vadd.xlane.f32.xlu0 %v1157
  %v1159 = vpop.xlane.xlu0 %1158
  %v1160 = vsel %vm217, %v1156, 0.0
  %1161 = vadd.xlane.f32.xlu0 %v1160
  %v1162 = vpop.xlane.xlu0 %1161
  %v1163 = vadd.f32 %v1159, %v228
  %v1164 = vadd.f32 %v1162, %v228
  %v1167 = vperm.slane %v1163, %v235
  %v1168 = vperm.slane %v1164, %v235
  %v1169 = vsel %vm96, %v1168, %v1167
  %v1171 = vsel %vm240, %v1169, -inf
  %1172 = vmax.xlane.f32.xlu0 %v1171
  %v1173 = vpop.xlane.xlu0 %1172
  %v1175 = vperm.slane %v1173, 0
  %v1176 = vperm.slane %v1173, 1
  %v1179 = vsub.f32 %v1163, %v1175
  %v1180 = vsub.f32 %v1164, %v1176
  %v1181 = vmul.f32 %v1179, 1.442695
  %v1182 = vpow.pop %v1181
  %v1183 = vmul.f32 %v1180, 1.442695
  %v1184 = vpow.pop %v1183
  %1187 = vset.pattern.permute.xlu0 0
  %1188 = vperm.xlu0 %1187, %v1182
  %v1189 = vpop.permute.xlu0 %1188
  %1190 = vset.pattern.permute.xlu0 0
  %1191 = vperm.xlu0 %1190, %v1184
  %v1192 = vpop.permute.xlu0 %1191
  %v1193 = vperm.slane %v1189, %v235
  %v1194 = vperm.slane %v1192, %v235
  %v1195 = vsel %vm96, %v1194, %v1193
  %v1197 = vsel %vm240, %v1195, 0.0
  %1198 = vadd.xlane.f32.xlu0 %v1197
  %v1199 = vpop.xlane.xlu0 %1198
  %v1200 = vrcp.pop %v1199
  %v1202 = vperm.slane %v1200, 0
  %v1203 = vperm.slane %v1200, 1
  %v1206 = vmul.f32 %v1182, %v1202
  %v1207 = vmul.f32 %v1184, %v1203
  %1209 = vset.pattern.permute.xlu0 0
  %1210 = vperm.xlu0 %1209, %v1206
  %v1211 = vpop.permute.xlu0 %1210
  %1214 = vset.pattern.permute.xlu0 0
  %1215 = vperm.xlu0 %1214, %v1207
  %v1216 = vpop.permute.xlu0 %1215
  %v1218 = vmul.f32 %v60, %v1211
  %v1219 = vmul.f32 %v61, %v1216
  %v1220 = vsel %vm62, %v1218, 0.0
  %v1221 = vrot.slane %v1220, 4
  %v1222 = vadd.f32 %v1220, %v1221
  %v1223 = vrot.slane %v1222, 2
  %v1224 = vadd.f32 %v1222, %v1223
  %v1225 = vrot.slane %v1224, 1
  %v1226 = vadd.f32 %v1224, %v1225
  %v1227 = vsel %vm62, %v1219, 0.0
  %v1228 = vrot.slane %v1227, 4
  %v1229 = vadd.f32 %v1227, %v1228
  %v1230 = vrot.slane %v1229, 2
  %v1231 = vadd.f32 %v1229, %v1230
  %v1232 = vrot.slane %v1231, 1
  %v1233 = vadd.f32 %v1231, %v1232
  %s1234 = scalar_lea.vmem %s0, 8
  %v1235 = vld [vmem:[%s1234] sm:$0x3]
  %v1238 = vsel %vm96, %v1233, %v1226
  %v1239 = vsel %vm62, %v1238, 0
  %1241 = vmatpush.msra.mxu0 0.0
  %1242 = vmatpush.msra.mxu0 0.0
  %1243 = vmatpush.msra.mxu0 0.0
  %1244 = vmatpush.msra.mxu0 0.0
  %1245 = vmatpush.msra.mxu0 0.0
  %1246 = vmatpush.msra.mxu0 0.0
  %1247 = vmatpush.msra.mxu0 0.0
  %1248 = vmatpush.msra.mxu0 0.0
  %1249 = vmatpush.msra.mxu0 0.0
  %1250 = vmatpush.msra.mxu0 0.0
  %1251 = vmatpush.msra.mxu0 0.0
  %1252 = vmatpush.msra.mxu0 0.0
  %1253 = vmatpush.msra.mxu0 %v169
  %1254 = vmatpush.msra.mxu0 %v168
  %1255 = vmatpush.msra.mxu0 %v167
  %1256 = vmatpush.msra.mxu0 %v166
  %1257 = vmatmul.f32.gmra.mxu0 %v1239
  %v1258 = vpop.f32.mrf.mxu0
  %v1259 = vadd.f32 0.0, %v1258
  %1260 = vdwg.mxu0
  %v1262 = vsel %vm217, %v1235, 0
  %1264 = vmatpush.msra.mxu0 0.0
  %1265 = vmatpush.msra.mxu0 0.0
  %1266 = vmatpush.msra.mxu0 0.0
  %1267 = vmatpush.msra.mxu0 0.0
  %1268 = vmatpush.msra.mxu0 0.0
  %1269 = vmatpush.msra.mxu0 0.0
  %1270 = vmatpush.msra.mxu0 0.0
  %1271 = vmatpush.msra.mxu0 0.0
  %1272 = vmatpush.msra.mxu0 0.0
  %1273 = vmatpush.msra.mxu0 0.0
  %1274 = vmatpush.msra.mxu0 0.0
  %1275 = vmatpush.msra.mxu0 0.0
  %1276 = vmatpush.msra.mxu0 0.0
  %1277 = vmatpush.msra.mxu0 0.0
  %1278 = vmatpush.msra.mxu0 %v165
  %1279 = vmatpush.msra.mxu0 %v164
  %1280 = vmatmul.f32.gmra.mxu0 %v1262
  %v1281 = vpop.f32.mrf.mxu0
  %v1282 = vadd.f32 %v1259, %v1281
  %1283 = vdwg.mxu0
  %v1284 = vadd.f32 %v1282, %v354
  %1285 = vmatpush.msra.mxu0 0.0
  %1286 = vmatpush.msra.mxu0 0.0
  %1287 = vmatpush.msra.mxu0 0.0
  %1288 = vmatpush.msra.mxu0 0.0
  %1289 = vmatpush.msra.mxu0 0.0
  %1290 = vmatpush.msra.mxu0 0.0
  %1291 = vmatpush.msra.mxu0 0.0
  %1292 = vmatpush.msra.mxu0 0.0
  %1293 = vmatpush.msra.mxu0 0.0
  %1294 = vmatpush.msra.mxu0 0.0
  %1295 = vmatpush.msra.mxu0 0.0
  %1296 = vmatpush.msra.mxu0 0.0
  %1297 = vmatpush.msra.mxu0 %v174
  %1298 = vmatpush.msra.mxu0 %v173
  %1299 = vmatpush.msra.mxu0 %v172
  %1300 = vmatpush.msra.mxu0 %v171
  %1301 = vmatmul.f32.gmra.mxu0 %v1123
  %v1302 = vpop.f32.mrf.mxu0
  %v1303 = vadd.f32 0.0, %v1302
  %1304 = vdwg.mxu0
  %v1305 = vadd.f32 %v1284, %v1303
  %v1306 = vadd.f32 %v1305, %v379
  %v1307 = vxor.u32 %v1306, 2147483648
  %v1308 = vmul.f32 %v1307, 1.442695
  %v1309 = vpow.pop %v1308
  %v1310 = vadd.f32 %v1309, 1.0
  %v1311 = vrcp.pop %v1310
  %v1312 = vmul.f32 %v1310, %v1311
  %v1313 = vsub.f32 1.0, %v1312
  %v1314 = vmul.f32 %v1311, %v1313
  %v1315 = vadd.f32 %v1311, %v1314
  %vm1316 = vweird.f32 %v1310
  %vm1317 = vweird.f32 %v1311
  %vm1318 = vmor %vm1316, %vm1317
  %v1319 = vsel %vm1318, %v1311, %v1315
  %v1320 = vand.u32 2147483647, %v1310
  %vm1321 = vcmp.eq.f32.partialorder %v1320, 8.507059e+37
  %v1322 = vand.u32 %v1310, 2147483648
  %v1323 = vor.u32 1.1754944e-38, %v1322
  %v1324 = vsel %vm1321, %v1323, %v1319
  %v1325 = vmul.f32 1.0, %v1324
  %v1326 = vtanh.pop %v1306
  %v1327 = vmul.f32 %v1325, %v1106
  %1329 = vrot.lane.b32.xlu0 %v1326, 64
  %v1330 = vpop.permute.xlu0 %1329
  %v1332 = vmul.f32 %v1325, %v1330
  %1334 = vrot.lane.b32.xlu0 %v1332, 32
  %v1335 = vpop.permute.xlu0 %1334
  %v1337 = vadd.f32 %v1327, %v1335
  %v1338 = vtanh.pop %v1337
  %1340 = vrot.lane.b32.xlu0 %v1338, 64
  %v1341 = vpop.permute.xlu0 %1340
  %v1343 = vmul.f32 %v1325, %v1341
  %1345 = vrot.lane.b32.xlu0 %v1343, 32
  %v1346 = vpop.permute.xlu0 %1345
  %1348 = vst.msk [vmem:[#allocation2 + $0x8] sm:$0x3] %vm423, %v1346
  %v1349 = vperm.slane %v1211, %v235
  %v1350 = vperm.slane %v1216, %v235
  %v1351 = vsel %vm96, %v1350, %v1349
  %1353 = vst.msk [vmem:[%s18 + $0x8] sm:$0x3] %vm240, %v1351
  %v1354 = vsel %vm62, %v1346, 0
  %1356 = vmatpush.msra.mxu0 0.0
  %1357 = vmatpush.msra.mxu0 0.0
  %1358 = vmatpush.msra.mxu0 0.0
  %1359 = vmatpush.msra.mxu0 0.0
  %1360 = vmatpush.msra.mxu0 0.0
  %1361 = vmatpush.msra.mxu0 0.0
  %1362 = vmatpush.msra.mxu0 0.0
  %1363 = vmatpush.msra.mxu0 0.0
  %1364 = vmatpush.msra.mxu0 0.0
  %1365 = vmatpush.msra.mxu0 0.0
  %1366 = vmatpush.msra.mxu0 0.0
  %1367 = vmatpush.msra.mxu0 0.0
  %1368 = vmatpush.msra.mxu0 %v160
  %1369 = vmatpush.msra.mxu0 %v159
  %1370 = vmatpush.msra.mxu0 %v158
  %1371 = vmatpush.msra.mxu0 %v157
  %1372 = vmatmul.f32.gmra.mxu0 %v1354
  %v1373 = vpop.f32.mrf.mxu0
  %v1374 = vadd.f32 %v177, %v1373
  %1375 = vdwg.mxu0
  %v1377 = vrot.slane %v1374, 1
  %v1378 = vperm.slane %v1374, 0
  %v1379 = vperm.slane %v1377, 0
  %v1382 = vadd.f32 %v152, %v1378
  %v1383 = vadd.f32 %v155, %v1379
  %v1384 = vtanh.pop %v1382
  %v1385 = vtanh.pop %v1383
  %v1386 = vmul.f32 %v1384, %v213
  %v1387 = vmul.f32 %v1385, %v213
  %v1388 = vsel %vm217, %v1386, 0.0
  %1389 = vadd.xlane.f32.xlu0 %v1388
  %v1390 = vpop.xlane.xlu0 %1389
  %v1391 = vsel %vm217, %v1387, 0.0
  %1392 = vadd.xlane.f32.xlu0 %v1391
  %v1393 = vpop.xlane.xlu0 %1392
  %v1394 = vadd.f32 %v1390, %v228
  %v1395 = vadd.f32 %v1393, %v228
  %v1398 = vperm.slane %v1394, %v235
  %v1399 = vperm.slane %v1395, %v235
  %v1400 = vsel %vm96, %v1399, %v1398
  %v1402 = vsel %vm240, %v1400, -inf
  %1403 = vmax.xlane.f32.xlu0 %v1402
  %v1404 = vpop.xlane.xlu0 %1403
  %v1406 = vperm.slane %v1404, 0
  %v1407 = vperm.slane %v1404, 1
  %v1410 = vsub.f32 %v1394, %v1406
  %v1411 = vsub.f32 %v1395, %v1407
  %v1412 = vmul.f32 %v1410, 1.442695
  %v1413 = vpow.pop %v1412
  %v1414 = vmul.f32 %v1411, 1.442695
  %v1415 = vpow.pop %v1414
  %1418 = vset.pattern.permute.xlu0 0
  %1419 = vperm.xlu0 %1418, %v1413
  %v1420 = vpop.permute.xlu0 %1419
  %1421 = vset.pattern.permute.xlu0 0
  %1422 = vperm.xlu0 %1421, %v1415
  %v1423 = vpop.permute.xlu0 %1422
  %v1424 = vperm.slane %v1420, %v235
  %v1425 = vperm.slane %v1423, %v235
  %v1426 = vsel %vm96, %v1425, %v1424
  %v1428 = vsel %vm240, %v1426, 0.0
  %1429 = vadd.xlane.f32.xlu0 %v1428
  %v1430 = vpop.xlane.xlu0 %1429
  %v1431 = vrcp.pop %v1430
  %v1433 = vperm.slane %v1431, 0
  %v1434 = vperm.slane %v1431, 1
  %v1437 = vmul.f32 %v1413, %v1433
  %v1438 = vmul.f32 %v1415, %v1434
  %1440 = vset.pattern.permute.xlu0 0
  %1441 = vperm.xlu0 %1440, %v1437
  %v1442 = vpop.permute.xlu0 %1441
  %1445 = vset.pattern.permute.xlu0 0
  %1446 = vperm.xlu0 %1445, %v1438
  %v1447 = vpop.permute.xlu0 %1446
  %v1449 = vmul.f32 %v60, %v1442
  %v1450 = vmul.f32 %v61, %v1447
  %v1451 = vsel %vm62, %v1449, 0.0
  %v1452 = vrot.slane %v1451, 4
  %v1453 = vadd.f32 %v1451, %v1452
  %v1454 = vrot.slane %v1453, 2
  %v1455 = vadd.f32 %v1453, %v1454
  %v1456 = vrot.slane %v1455, 1
  %v1457 = vadd.f32 %v1455, %v1456
  %v1458 = vsel %vm62, %v1450, 0.0
  %v1459 = vrot.slane %v1458, 4
  %v1460 = vadd.f32 %v1458, %v1459
  %v1461 = vrot.slane %v1460, 2
  %v1462 = vadd.f32 %v1460, %v1461
  %v1463 = vrot.slane %v1462, 1
  %v1464 = vadd.f32 %v1462, %v1463
  %s1465 = scalar_lea.vmem %s0, 10
  %v1466 = vld [vmem:[%s1465] sm:$0x3]
  %v1469 = vsel %vm96, %v1464, %v1457
  %v1470 = vsel %vm62, %v1469, 0
  %1472 = vmatpush.msra.mxu0 0.0
  %1473 = vmatpush.msra.mxu0 0.0
  %1474 = vmatpush.msra.mxu0 0.0
  %1475 = vmatpush.msra.mxu0 0.0
  %1476 = vmatpush.msra.mxu0 0.0
  %1477 = vmatpush.msra.mxu0 0.0
  %1478 = vmatpush.msra.mxu0 0.0
  %1479 = vmatpush.msra.mxu0 0.0
  %1480 = vmatpush.msra.mxu0 0.0
  %1481 = vmatpush.msra.mxu0 0.0
  %1482 = vmatpush.msra.mxu0 0.0
  %1483 = vmatpush.msra.mxu0 0.0
  %1484 = vmatpush.msra.mxu0 %v169
  %1485 = vmatpush.msra.mxu0 %v168
  %1486 = vmatpush.msra.mxu0 %v167
  %1487 = vmatpush.msra.mxu0 %v166
  %1488 = vmatmul.f32.gmra.mxu0 %v1470
  %v1489 = vpop.f32.mrf.mxu0
  %v1490 = vadd.f32 0.0, %v1489
  %1491 = vdwg.mxu0
  %v1493 = vsel %vm217, %v1466, 0
  %1495 = vmatpush.msra.mxu0 0.0
  %1496 = vmatpush.msra.mxu0 0.0
  %1497 = vmatpush.msra.mxu0 0.0
  %1498 = vmatpush.msra.mxu0 0.0
  %1499 = vmatpush.msra.mxu0 0.0
  %1500 = vmatpush.msra.mxu0 0.0
  %1501 = vmatpush.msra.mxu0 0.0
  %1502 = vmatpush.msra.mxu0 0.0
  %1503 = vmatpush.msra.mxu0 0.0
  %1504 = vmatpush.msra.mxu0 0.0
  %1505 = vmatpush.msra.mxu0 0.0
  %1506 = vmatpush.msra.mxu0 0.0
  %1507 = vmatpush.msra.mxu0 0.0
  %1508 = vmatpush.msra.mxu0 0.0
  %1509 = vmatpush.msra.mxu0 %v165
  %1510 = vmatpush.msra.mxu0 %v164
  %1511 = vmatmul.f32.gmra.mxu0 %v1493
  %v1512 = vpop.f32.mrf.mxu0
  %v1513 = vadd.f32 %v1490, %v1512
  %1514 = vdwg.mxu0
  %v1515 = vadd.f32 %v1513, %v354
  %1516 = vmatpush.msra.mxu0 0.0
  %1517 = vmatpush.msra.mxu0 0.0
  %1518 = vmatpush.msra.mxu0 0.0
  %1519 = vmatpush.msra.mxu0 0.0
  %1520 = vmatpush.msra.mxu0 0.0
  %1521 = vmatpush.msra.mxu0 0.0
  %1522 = vmatpush.msra.mxu0 0.0
  %1523 = vmatpush.msra.mxu0 0.0
  %1524 = vmatpush.msra.mxu0 0.0
  %1525 = vmatpush.msra.mxu0 0.0
  %1526 = vmatpush.msra.mxu0 0.0
  %1527 = vmatpush.msra.mxu0 0.0
  %1528 = vmatpush.msra.mxu0 %v174
  %1529 = vmatpush.msra.mxu0 %v173
  %1530 = vmatpush.msra.mxu0 %v172
  %1531 = vmatpush.msra.mxu0 %v171
  %1532 = vmatmul.f32.gmra.mxu0 %v1354
  %v1533 = vpop.f32.mrf.mxu0
  %v1534 = vadd.f32 0.0, %v1533
  %1535 = vdwg.mxu0
  %v1536 = vadd.f32 %v1515, %v1534
  %v1537 = vadd.f32 %v1536, %v379
  %v1538 = vxor.u32 %v1537, 2147483648
  %v1539 = vmul.f32 %v1538, 1.442695
  %v1540 = vpow.pop %v1539
  %v1541 = vadd.f32 %v1540, 1.0
  %v1542 = vrcp.pop %v1541
  %v1543 = vmul.f32 %v1541, %v1542
  %v1544 = vsub.f32 1.0, %v1543
  %v1545 = vmul.f32 %v1542, %v1544
  %v1546 = vadd.f32 %v1542, %v1545
  %vm1547 = vweird.f32 %v1541
  %vm1548 = vweird.f32 %v1542
  %vm1549 = vmor %vm1547, %vm1548
  %v1550 = vsel %vm1549, %v1542, %v1546
  %v1551 = vand.u32 2147483647, %v1541
  %vm1552 = vcmp.eq.f32.partialorder %v1551, 8.507059e+37
  %v1553 = vand.u32 %v1541, 2147483648
  %v1554 = vor.u32 1.1754944e-38, %v1553
  %v1555 = vsel %vm1552, %v1554, %v1550
  %v1556 = vmul.f32 1.0, %v1555
  %v1557 = vtanh.pop %v1537
  %v1558 = vmul.f32 %v1556, %v1337
  %1560 = vrot.lane.b32.xlu0 %v1557, 64
  %v1561 = vpop.permute.xlu0 %1560
  %v1563 = vmul.f32 %v1556, %v1561
  %1565 = vrot.lane.b32.xlu0 %v1563, 32
  %v1566 = vpop.permute.xlu0 %1565
  %v1568 = vadd.f32 %v1558, %v1566
  %v1569 = vtanh.pop %v1568
  %1571 = vrot.lane.b32.xlu0 %v1569, 64
  %v1572 = vpop.permute.xlu0 %1571
  %v1574 = vmul.f32 %v1556, %v1572
  %1576 = vrot.lane.b32.xlu0 %v1574, 32
  %v1577 = vpop.permute.xlu0 %1576
  %1579 = vst.msk [vmem:[#allocation2 + $0xa] sm:$0x3] %vm423, %v1577
  %v1580 = vperm.slane %v1442, %v235
  %v1581 = vperm.slane %v1447, %v235
  %v1582 = vsel %vm96, %v1581, %v1580
  %1584 = vst.msk [vmem:[%s18 + $0xa] sm:$0x3] %vm240, %v1582
  %v1585 = vsel %vm62, %v1577, 0
  %1587 = vmatpush.msra.mxu0 0.0
  %1588 = vmatpush.msra.mxu0 0.0
  %1589 = vmatpush.msra.mxu0 0.0
  %1590 = vmatpush.msra.mxu0 0.0
  %1591 = vmatpush.msra.mxu0 0.0
  %1592 = vmatpush.msra.mxu0 0.0
  %1593 = vmatpush.msra.mxu0 0.0
  %1594 = vmatpush.msra.mxu0 0.0
  %1595 = vmatpush.msra.mxu0 0.0
  %1596 = vmatpush.msra.mxu0 0.0
  %1597 = vmatpush.msra.mxu0 0.0
  %1598 = vmatpush.msra.mxu0 0.0
  %1599 = vmatpush.msra.mxu0 %v160
  %1600 = vmatpush.msra.mxu0 %v159
  %1601 = vmatpush.msra.mxu0 %v158
  %1602 = vmatpush.msra.mxu0 %v157
  %1603 = vmatmul.f32.gmra.mxu0 %v1585
  %v1604 = vpop.f32.mrf.mxu0
  %v1605 = vadd.f32 %v177, %v1604
  %1606 = vdwg.mxu0
  %v1608 = vrot.slane %v1605, 1
  %v1609 = vperm.slane %v1605, 0
  %v1610 = vperm.slane %v1608, 0
  %v1613 = vadd.f32 %v152, %v1609
  %v1614 = vadd.f32 %v155, %v1610
  %v1615 = vtanh.pop %v1613
  %v1616 = vtanh.pop %v1614
  %v1617 = vmul.f32 %v1615, %v213
  %v1618 = vmul.f32 %v1616, %v213
  %v1619 = vsel %vm217, %v1617, 0.0
  %1620 = vadd.xlane.f32.xlu0 %v1619
  %v1621 = vpop.xlane.xlu0 %1620
  %v1622 = vsel %vm217, %v1618, 0.0
  %1623 = vadd.xlane.f32.xlu0 %v1622
  %v1624 = vpop.xlane.xlu0 %1623
  %v1625 = vadd.f32 %v1621, %v228
  %v1626 = vadd.f32 %v1624, %v228
  %v1629 = vperm.slane %v1625, %v235
  %v1630 = vperm.slane %v1626, %v235
  %v1631 = vsel %vm96, %v1630, %v1629
  %v1633 = vsel %vm240, %v1631, -inf
  %1634 = vmax.xlane.f32.xlu0 %v1633
  %v1635 = vpop.xlane.xlu0 %1634
  %v1637 = vperm.slane %v1635, 0
  %v1638 = vperm.slane %v1635, 1
  %v1641 = vsub.f32 %v1625, %v1637
  %v1642 = vsub.f32 %v1626, %v1638
  %v1643 = vmul.f32 %v1641, 1.442695
  %v1644 = vpow.pop %v1643
  %v1645 = vmul.f32 %v1642, 1.442695
  %v1646 = vpow.pop %v1645
  %1649 = vset.pattern.permute.xlu0 0
  %1650 = vperm.xlu0 %1649, %v1644
  %v1651 = vpop.permute.xlu0 %1650
  %1652 = vset.pattern.permute.xlu0 0
  %1653 = vperm.xlu0 %1652, %v1646
  %v1654 = vpop.permute.xlu0 %1653
  %v1655 = vperm.slane %v1651, %v235
  %v1656 = vperm.slane %v1654, %v235
  %v1657 = vsel %vm96, %v1656, %v1655
  %v1659 = vsel %vm240, %v1657, 0.0
  %1660 = vadd.xlane.f32.xlu0 %v1659
  %v1661 = vpop.xlane.xlu0 %1660
  %v1662 = vrcp.pop %v1661
  %v1664 = vperm.slane %v1662, 0
  %v1665 = vperm.slane %v1662, 1
  %v1668 = vmul.f32 %v1644, %v1664
  %v1669 = vmul.f32 %v1646, %v1665
  %1671 = vset.pattern.permute.xlu0 0
  %1672 = vperm.xlu0 %1671, %v1668
  %v1673 = vpop.permute.xlu0 %1672
  %1676 = vset.pattern.permute.xlu0 0
  %1677 = vperm.xlu0 %1676, %v1669
  %v1678 = vpop.permute.xlu0 %1677
  %v1680 = vmul.f32 %v60, %v1673
  %v1681 = vmul.f32 %v61, %v1678
  %v1682 = vsel %vm62, %v1680, 0.0
  %v1683 = vrot.slane %v1682, 4
  %v1684 = vadd.f32 %v1682, %v1683
  %v1685 = vrot.slane %v1684, 2
  %v1686 = vadd.f32 %v1684, %v1685
  %v1687 = vrot.slane %v1686, 1
  %v1688 = vadd.f32 %v1686, %v1687
  %v1689 = vsel %vm62, %v1681, 0.0
  %v1690 = vrot.slane %v1689, 4
  %v1691 = vadd.f32 %v1689, %v1690
  %v1692 = vrot.slane %v1691, 2
  %v1693 = vadd.f32 %v1691, %v1692
  %v1694 = vrot.slane %v1693, 1
  %v1695 = vadd.f32 %v1693, %v1694
  %s1696 = scalar_lea.vmem %s0, 12
  %v1697 = vld [vmem:[%s1696] sm:$0x3]
  %v1700 = vsel %vm96, %v1695, %v1688
  %v1701 = vsel %vm62, %v1700, 0
  %1703 = vmatpush.msra.mxu0 0.0
  %1704 = vmatpush.msra.mxu0 0.0
  %1705 = vmatpush.msra.mxu0 0.0
  %1706 = vmatpush.msra.mxu0 0.0
  %1707 = vmatpush.msra.mxu0 0.0
  %1708 = vmatpush.msra.mxu0 0.0
  %1709 = vmatpush.msra.mxu0 0.0
  %1710 = vmatpush.msra.mxu0 0.0
  %1711 = vmatpush.msra.mxu0 0.0
  %1712 = vmatpush.msra.mxu0 0.0
  %1713 = vmatpush.msra.mxu0 0.0
  %1714 = vmatpush.msra.mxu0 0.0
  %1715 = vmatpush.msra.mxu0 %v169
  %1716 = vmatpush.msra.mxu0 %v168
  %1717 = vmatpush.msra.mxu0 %v167
  %1718 = vmatpush.msra.mxu0 %v166
  %1719 = vmatmul.f32.gmra.mxu0 %v1701
  %v1720 = vpop.f32.mrf.mxu0
  %v1721 = vadd.f32 0.0, %v1720
  %1722 = vdwg.mxu0
  %v1724 = vsel %vm217, %v1697, 0
  %1726 = vmatpush.msra.mxu0 0.0
  %1727 = vmatpush.msra.mxu0 0.0
  %1728 = vmatpush.msra.mxu0 0.0
  %1729 = vmatpush.msra.mxu0 0.0
  %1730 = vmatpush.msra.mxu0 0.0
  %1731 = vmatpush.msra.mxu0 0.0
  %1732 = vmatpush.msra.mxu0 0.0
  %1733 = vmatpush.msra.mxu0 0.0
  %1734 = vmatpush.msra.mxu0 0.0
  %1735 = vmatpush.msra.mxu0 0.0
  %1736 = vmatpush.msra.mxu0 0.0
  %1737 = vmatpush.msra.mxu0 0.0
  %1738 = vmatpush.msra.mxu0 0.0
  %1739 = vmatpush.msra.mxu0 0.0
  %1740 = vmatpush.msra.mxu0 %v165
  %1741 = vmatpush.msra.mxu0 %v164
  %1742 = vmatmul.f32.gmra.mxu0 %v1724
  %v1743 = vpop.f32.mrf.mxu0
  %v1744 = vadd.f32 %v1721, %v1743
  %1745 = vdwg.mxu0
  %v1746 = vadd.f32 %v1744, %v354
  %1747 = vmatpush.msra.mxu0 0.0
  %1748 = vmatpush.msra.mxu0 0.0
  %1749 = vmatpush.msra.mxu0 0.0
  %1750 = vmatpush.msra.mxu0 0.0
  %1751 = vmatpush.msra.mxu0 0.0
  %1752 = vmatpush.msra.mxu0 0.0
  %1753 = vmatpush.msra.mxu0 0.0
  %1754 = vmatpush.msra.mxu0 0.0
  %1755 = vmatpush.msra.mxu0 0.0
  %1756 = vmatpush.msra.mxu0 0.0
  %1757 = vmatpush.msra.mxu0 0.0
  %1758 = vmatpush.msra.mxu0 0.0
  %1759 = vmatpush.msra.mxu0 %v174
  %1760 = vmatpush.msra.mxu0 %v173
  %1761 = vmatpush.msra.mxu0 %v172
  %1762 = vmatpush.msra.mxu0 %v171
  %1763 = vmatmul.f32.gmra.mxu0 %v1585
  %v1764 = vpop.f32.mrf.mxu0
  %v1765 = vadd.f32 0.0, %v1764
  %1766 = vdwg.mxu0
  %v1767 = vadd.f32 %v1746, %v1765
  %v1768 = vadd.f32 %v1767, %v379
  %v1769 = vxor.u32 %v1768, 2147483648
  %v1770 = vmul.f32 %v1769, 1.442695
  %v1771 = vpow.pop %v1770
  %v1772 = vadd.f32 %v1771, 1.0
  %v1773 = vrcp.pop %v1772
  %v1774 = vmul.f32 %v1772, %v1773
  %v1775 = vsub.f32 1.0, %v1774
  %v1776 = vmul.f32 %v1773, %v1775
  %v1777 = vadd.f32 %v1773, %v1776
  %vm1778 = vweird.f32 %v1772
  %vm1779 = vweird.f32 %v1773
  %vm1780 = vmor %vm1778, %vm1779
  %v1781 = vsel %vm1780, %v1773, %v1777
  %v1782 = vand.u32 2147483647, %v1772
  %vm1783 = vcmp.eq.f32.partialorder %v1782, 8.507059e+37
  %v1784 = vand.u32 %v1772, 2147483648
  %v1785 = vor.u32 1.1754944e-38, %v1784
  %v1786 = vsel %vm1783, %v1785, %v1781
  %v1787 = vmul.f32 1.0, %v1786
  %v1788 = vtanh.pop %v1768
  %v1789 = vmul.f32 %v1787, %v1568
  %1791 = vrot.lane.b32.xlu0 %v1788, 64
  %v1792 = vpop.permute.xlu0 %1791
  %v1794 = vmul.f32 %v1787, %v1792
  %1796 = vrot.lane.b32.xlu0 %v1794, 32
  %v1797 = vpop.permute.xlu0 %1796
  %v1799 = vadd.f32 %v1789, %v1797
  %v1800 = vtanh.pop %v1799
  %1802 = vrot.lane.b32.xlu0 %v1800, 64
  %v1803 = vpop.permute.xlu0 %1802
  %v1805 = vmul.f32 %v1787, %v1803
  %1807 = vrot.lane.b32.xlu0 %v1805, 32
  %v1808 = vpop.permute.xlu0 %1807
  %1810 = vst.msk [vmem:[#allocation2 + $0xc] sm:$0x3] %vm423, %v1808
  %v1811 = vperm.slane %v1673, %v235
  %v1812 = vperm.slane %v1678, %v235
  %v1813 = vsel %vm96, %v1812, %v1811
  %1815 = vst.msk [vmem:[%s18 + $0xc] sm:$0x3] %vm240, %v1813
  %v1816 = vsel %vm62, %v1808, 0
  %1818 = vmatpush.msra.mxu0 0.0
  %1819 = vmatpush.msra.mxu0 0.0
  %1820 = vmatpush.msra.mxu0 0.0
  %1821 = vmatpush.msra.mxu0 0.0
  %1822 = vmatpush.msra.mxu0 0.0
  %1823 = vmatpush.msra.mxu0 0.0
  %1824 = vmatpush.msra.mxu0 0.0
  %1825 = vmatpush.msra.mxu0 0.0
  %1826 = vmatpush.msra.mxu0 0.0
  %1827 = vmatpush.msra.mxu0 0.0
  %1828 = vmatpush.msra.mxu0 0.0
  %1829 = vmatpush.msra.mxu0 0.0
  %1830 = vmatpush.msra.mxu0 %v160
  %1831 = vmatpush.msra.mxu0 %v159
  %1832 = vmatpush.msra.mxu0 %v158
  %1833 = vmatpush.msra.mxu0 %v157
  %1834 = vmatmul.f32.gmra.mxu0 %v1816
  %v1835 = vpop.f32.mrf.mxu0
  %v1836 = vadd.f32 %v177, %v1835
  %1837 = vdwg.mxu0
  %v1839 = vrot.slane %v1836, 1
  %v1840 = vperm.slane %v1836, 0
  %v1841 = vperm.slane %v1839, 0
  %v1844 = vadd.f32 %v152, %v1840
  %v1845 = vadd.f32 %v155, %v1841
  %v1846 = vtanh.pop %v1844
  %v1847 = vtanh.pop %v1845
  %v1848 = vmul.f32 %v1846, %v213
  %v1849 = vmul.f32 %v1847, %v213
  %v1850 = vsel %vm217, %v1848, 0.0
  %1851 = vadd.xlane.f32.xlu0 %v1850
  %v1852 = vpop.xlane.xlu0 %1851
  %v1853 = vsel %vm217, %v1849, 0.0
  %1854 = vadd.xlane.f32.xlu0 %v1853
  %v1855 = vpop.xlane.xlu0 %1854
  %v1856 = vadd.f32 %v1852, %v228
  %v1857 = vadd.f32 %v1855, %v228
  %v1860 = vperm.slane %v1856, %v235
  %v1861 = vperm.slane %v1857, %v235
  %v1862 = vsel %vm96, %v1861, %v1860
  %v1864 = vsel %vm240, %v1862, -inf
  %1865 = vmax.xlane.f32.xlu0 %v1864
  %v1866 = vpop.xlane.xlu0 %1865
  %v1868 = vperm.slane %v1866, 0
  %v1869 = vperm.slane %v1866, 1
  %v1872 = vsub.f32 %v1856, %v1868
  %v1873 = vsub.f32 %v1857, %v1869
  %v1874 = vmul.f32 %v1872, 1.442695
  %v1875 = vpow.pop %v1874
  %v1876 = vmul.f32 %v1873, 1.442695
  %v1877 = vpow.pop %v1876
  %1880 = vset.pattern.permute.xlu0 0
  %1881 = vperm.xlu0 %1880, %v1875
  %v1882 = vpop.permute.xlu0 %1881
  %1883 = vset.pattern.permute.xlu0 0
  %1884 = vperm.xlu0 %1883, %v1877
  %v1885 = vpop.permute.xlu0 %1884
  %v1886 = vperm.slane %v1882, %v235
  %v1887 = vperm.slane %v1885, %v235
  %v1888 = vsel %vm96, %v1887, %v1886
  %v1890 = vsel %vm240, %v1888, 0.0
  %1891 = vadd.xlane.f32.xlu0 %v1890
  %v1892 = vpop.xlane.xlu0 %1891
  %v1893 = vrcp.pop %v1892
  %v1895 = vperm.slane %v1893, 0
  %v1896 = vperm.slane %v1893, 1
  %v1899 = vmul.f32 %v1875, %v1895
  %v1900 = vmul.f32 %v1877, %v1896
  %1902 = vset.pattern.permute.xlu0 0
  %1903 = vperm.xlu0 %1902, %v1899
  %v1904 = vpop.permute.xlu0 %1903
  %1907 = vset.pattern.permute.xlu0 0
  %1908 = vperm.xlu0 %1907, %v1900
  %v1909 = vpop.permute.xlu0 %1908
  %v1911 = vmul.f32 %v60, %v1904
  %v1912 = vmul.f32 %v61, %v1909
  %v1913 = vsel %vm62, %v1911, 0.0
  %v1914 = vrot.slane %v1913, 4
  %v1915 = vadd.f32 %v1913, %v1914
  %v1916 = vrot.slane %v1915, 2
  %v1917 = vadd.f32 %v1915, %v1916
  %v1918 = vrot.slane %v1917, 1
  %v1919 = vadd.f32 %v1917, %v1918
  %v1920 = vsel %vm62, %v1912, 0.0
  %v1921 = vrot.slane %v1920, 4
  %v1922 = vadd.f32 %v1920, %v1921
  %v1923 = vrot.slane %v1922, 2
  %v1924 = vadd.f32 %v1922, %v1923
  %v1925 = vrot.slane %v1924, 1
  %v1926 = vadd.f32 %v1924, %v1925
  %s1927 = scalar_lea.vmem %s0, 14
  %v1928 = vld [vmem:[%s1927] sm:$0x3]
  %v1931 = vsel %vm96, %v1926, %v1919
  %v1932 = vsel %vm62, %v1931, 0
  %1934 = vmatpush.msra.mxu0 0.0
  %1935 = vmatpush.msra.mxu0 0.0
  %1936 = vmatpush.msra.mxu0 0.0
  %1937 = vmatpush.msra.mxu0 0.0
  %1938 = vmatpush.msra.mxu0 0.0
  %1939 = vmatpush.msra.mxu0 0.0
  %1940 = vmatpush.msra.mxu0 0.0
  %1941 = vmatpush.msra.mxu0 0.0
  %1942 = vmatpush.msra.mxu0 0.0
  %1943 = vmatpush.msra.mxu0 0.0
  %1944 = vmatpush.msra.mxu0 0.0
  %1945 = vmatpush.msra.mxu0 0.0
  %1946 = vmatpush.msra.mxu0 %v169
  %1947 = vmatpush.msra.mxu0 %v168
  %1948 = vmatpush.msra.mxu0 %v167
  %1949 = vmatpush.msra.mxu0 %v166
  %1950 = vmatmul.f32.gmra.mxu0 %v1932
  %v1951 = vpop.f32.mrf.mxu0
  %v1952 = vadd.f32 0.0, %v1951
  %1953 = vdwg.mxu0
  %v1955 = vsel %vm217, %v1928, 0
  %1957 = vmatpush.msra.mxu0 0.0
  %1958 = vmatpush.msra.mxu0 0.0
  %1959 = vmatpush.msra.mxu0 0.0
  %1960 = vmatpush.msra.mxu0 0.0
  %1961 = vmatpush.msra.mxu0 0.0
  %1962 = vmatpush.msra.mxu0 0.0
  %1963 = vmatpush.msra.mxu0 0.0
  %1964 = vmatpush.msra.mxu0 0.0
  %1965 = vmatpush.msra.mxu0 0.0
  %1966 = vmatpush.msra.mxu0 0.0
  %1967 = vmatpush.msra.mxu0 0.0
  %1968 = vmatpush.msra.mxu0 0.0
  %1969 = vmatpush.msra.mxu0 0.0
  %1970 = vmatpush.msra.mxu0 0.0
  %1971 = vmatpush.msra.mxu0 %v165
  %1972 = vmatpush.msra.mxu0 %v164
  %1973 = vmatmul.f32.gmra.mxu0 %v1955
  %v1974 = vpop.f32.mrf.mxu0
  %v1975 = vadd.f32 %v1952, %v1974
  %1976 = vdwg.mxu0
  %v1977 = vadd.f32 %v1975, %v354
  %1978 = vmatpush.msra.mxu0 0.0
  %1979 = vmatpush.msra.mxu0 0.0
  %1980 = vmatpush.msra.mxu0 0.0
  %1981 = vmatpush.msra.mxu0 0.0
  %1982 = vmatpush.msra.mxu0 0.0
  %1983 = vmatpush.msra.mxu0 0.0
  %1984 = vmatpush.msra.mxu0 0.0
  %1985 = vmatpush.msra.mxu0 0.0
  %1986 = vmatpush.msra.mxu0 0.0
  %1987 = vmatpush.msra.mxu0 0.0
  %1988 = vmatpush.msra.mxu0 0.0
  %1989 = vmatpush.msra.mxu0 0.0
  %1990 = vmatpush.msra.mxu0 %v174
  %1991 = vmatpush.msra.mxu0 %v173
  %1992 = vmatpush.msra.mxu0 %v172
  %1993 = vmatpush.msra.mxu0 %v171
  %1994 = vmatmul.f32.gmra.mxu0 %v1816
  %v1995 = vpop.f32.mrf.mxu0
  %v1996 = vadd.f32 0.0, %v1995
  %1997 = vdwg.mxu0
  %v1998 = vadd.f32 %v1977, %v1996
  %v1999 = vadd.f32 %v1998, %v379
  %v2000 = vxor.u32 %v1999, 2147483648
  %v2001 = vmul.f32 %v2000, 1.442695
  %v2002 = vpow.pop %v2001
  %v2003 = vadd.f32 %v2002, 1.0
  %v2004 = vrcp.pop %v2003
  %v2005 = vmul.f32 %v2003, %v2004
  %v2006 = vsub.f32 1.0, %v2005
  %v2007 = vmul.f32 %v2004, %v2006
  %v2008 = vadd.f32 %v2004, %v2007
  %vm2009 = vweird.f32 %v2003
  %vm2010 = vweird.f32 %v2004
  %vm2011 = vmor %vm2009, %vm2010
  %v2012 = vsel %vm2011, %v2004, %v2008
  %v2013 = vand.u32 2147483647, %v2003
  %vm2014 = vcmp.eq.f32.partialorder %v2013, 8.507059e+37
  %v2015 = vand.u32 %v2003, 2147483648
  %v2016 = vor.u32 1.1754944e-38, %v2015
  %v2017 = vsel %vm2014, %v2016, %v2012
  %v2018 = vmul.f32 1.0, %v2017
  %v2019 = vtanh.pop %v1999
  %v2020 = vmul.f32 %v2018, %v1799
  %2022 = vrot.lane.b32.xlu0 %v2019, 64
  %v2023 = vpop.permute.xlu0 %2022
  %v2025 = vmul.f32 %v2018, %v2023
  %2027 = vrot.lane.b32.xlu0 %v2025, 32
  %v2028 = vpop.permute.xlu0 %2027
  %v2030 = vadd.f32 %v2020, %v2028
  %v2031 = vtanh.pop %v2030
  %2033 = vrot.lane.b32.xlu0 %v2031, 64
  %v2034 = vpop.permute.xlu0 %2033
  %v2036 = vmul.f32 %v2018, %v2034
  %2038 = vrot.lane.b32.xlu0 %v2036, 32
  %v2039 = vpop.permute.xlu0 %2038
  %2041 = vst.msk [vmem:[#allocation2 + $0xe] sm:$0x3] %vm423, %v2039
  %v2042 = vperm.slane %v1904, %v235
  %v2043 = vperm.slane %v1909, %v235
  %v2044 = vsel %vm96, %v2043, %v2042
  %2046 = vst.msk [vmem:[%s18 + $0xe] sm:$0x3] %vm240, %v2044
  %v2047 = vld [vmem:[#allocation2] sm:$0xff]
  %v2048 = vld [vmem:[#allocation2 + $0x8] sm:$0xff]
  %v2049 = vld [vmem:[%s15] sm:$0xff]
  %v2050 = vld [vmem:[%s15 + $0x8] sm:$0xff]
  %v2051 = vld [vmem:[%s15 + $0x10] sm:$0xff]
  %v2052 = vld [vmem:[%s15 + $0x18] sm:$0xff]
  %v2053 = vld [vmem:[%s16] sm:$0x1]
  %v2055 = vperm.slane %v2053, 0
  %v2058 = vsel %vm62, %v2047, 0
  %v2061 = vsel %vm62, %v2048, 0
  %2063 = vmatpush.msra.mxu0 0.0
  %2064 = vmatpush.msra.mxu0 0.0
  %2065 = vmatpush.msra.mxu0 0.0
  %2066 = vmatpush.msra.mxu0 0.0
  %2067 = vmatpush.msra.mxu0 0.0
  %2068 = vmatpush.msra.mxu0 0.0
  %2069 = vmatpush.msra.mxu0 0.0
  %2070 = vmatpush.msra.mxu0 0.0
  %2071 = vmatpush.msra.mxu0 0.0
  %2072 = vmatpush.msra.mxu0 0.0
  %2073 = vmatpush.msra.mxu0 0.0
  %2074 = vmatpush.msra.mxu0 0.0
  %2075 = vmatpush.msra.mxu0 %v2052
  %2076 = vmatpush.msra.mxu0 %v2051
  %2077 = vmatpush.msra.mxu0 %v2050
  %2078 = vmatpush.msra.mxu0 %v2049
  %2079 = vmatmul.f32.gmra.mxu0 %v2058
  %v2080 = vpop.f32.mrf.mxu0
  %v2081 = vadd.f32 %v2055, %v2080
  %2082 = vmatmul.f32.gmra.mxu0 %v2061
  %v2083 = vpop.f32.mrf.mxu0
  %v2084 = vadd.f32 %v2055, %v2083
  %2085 = vdwg.mxu0
  %vm2086 = vcmask 523264
  %2087 = vst.msk [vmem:[%s17] sm:$0xff] %vm2086, %v2081
  %2088 = vst.msk [vmem:[%s17 + $0x8] sm:$0xff] %vm2086, %v2084
  // Predicated region
  $region70: #{attention_decoder_forward.1} parent=0 // pred_check
    _
  $region71: #{attention_decoder_forward.1} parent=0 // pred_check_branch
    %2090 = sbr.rel (0) target = $region73
  $region72: #{attention_decoder_forward.1} parent=0 // pred_region
    _
  $region73: #{attention_decoder_forward.1} parent=0 // pred_fallthru
    _
  // Predicated region
  $region74: #{attention_decoder_forward.1} parent=0 // pred_check
    _
  $region75: #{attention_decoder_forward.1} parent=0 // pred_check_branch
    %2092 = sbr.rel (0) target = $region77
  $region76: #{attention_decoder_forward.1} parent=0 // pred_region
    _
  $region77: #{attention_decoder_forward.1} parent=0 // pred_fallthru
    _
  // Predicated region
  $region78: #{attention_decoder_forward.1} parent=0 // pred_check
    _
  $region79: #{attention_decoder_forward.1} parent=0 // pred_check_branch
    %2094 = sbr.rel (0) target = $region81
  $region80: #{attention_decoder_forward.1} parent=0 // pred_region
    _
  $region81: #{attention_decoder_forward.1} parent=0 // pred_fallthru
    _
  // Predicated region
  $region82: #{attention_decoder_forward.1} parent=0 // pred_check
    _
  $region83: #{attention_decoder_forward.1} parent=0 // pred_check_branch
    %2096 = sbr.rel (0) target = $region85
  $region84: #{attention_decoder_forward.1} parent=0 // pred_region
    _
  $region85: #{attention_decoder_forward.1} parent=0 // pred_fallthru
    _

</llo_original>
